<compile_context>
chip_gen: v7x
topology: tpu7x:2x2x1
jax: 0.10.0
libtpu: 0.0.40
codegen_flags: <defaults>
</compile_context>

<pallas_src>
import functools

import jax
import jax.numpy as jnp
from jax.experimental import pallas as pl
from jax.experimental.pallas import tpu as pltpu

IN_DIM = 1024
HID = 256
HID2 = 2 * HID          # 512 = fused layer-1 width
OUT = 8
HEAD_PAD = 128          # lane-dense padded head width (cols 0:8 = q2, 8:16 = p2)


# --------------------------------------------------------------------------- #
# Kernel
# --------------------------------------------------------------------------- #
def body_model_kernel(x_ref, w1_ref, b1_ref, wh_ref, bh_ref, out_ref):
    # x_ref:  (TB, 1024) f32    (cast to the MXU compute dtype in-kernel)
    # w1_ref: (1024, 512)       fused [w_p1 | w_q1]   (bf16 or f32)
    # b1_ref: (1, 512)  f32     fused [b_p1 | b_q1]
    # wh_ref: (512, 128)        fused, zero-padded head weight
    # bh_ref: (1, 128)  f32     fused, zero-padded head bias
    # out_ref:(TB, 128)         cols 0:8 = q2, cols 8:16 = predict2
    x = x_ref[...].astype(w1_ref.dtype)          # in-VMEM cast (no extra HBM pass)

    # Fused layer 1: one (TB,1024)x(1024,512) GEMM, f32 accumulate,
    # f32 bias + ReLU epilogue.  y = [predict_1 | q1].
    y = jnp.dot(x, w1_ref[...], preferred_element_type=jnp.float32)
    y = jnp.maximum(y + b1_ref[...], 0.0)

    # Fused heads: one (TB,512)x(512,128) GEMM + fused bias.
    h = jnp.dot(y.astype(wh_ref.dtype), wh_ref[...],
                preferred_element_type=jnp.float32)
    out_ref[...] = (h + bh_ref[...]).astype(out_ref.dtype)


# --------------------------------------------------------------------------- #
# Wrapper
# --------------------------------------------------------------------------- #
def _pick_tile_b(B):
    """Batch tile: single 16-row-aligned tile for small B; for large B the
    biggest multiple of 256 (<=1024) that still gives >=2 grid steps."""
    if B <= 256:
        return max(16, ((B + 15) // 16) * 16)
    t = ((B // 2) // 256) * 256
    return max(256, min(1024, t))


def prepare_fused_params(params, use_bf16=True):
    """Fuse/pad/cast weights & biases ONCE at model-init time.

    Returns a tuple (w1, b1, wh, bh) consumed by body_model_forward."""
    compute_dtype = jnp.bfloat16 if use_bf16 else jnp.float32

    w1 = jnp.concatenate([params["w_p1"], params["w_q1"]], axis=1)        # (1024, 512)
    b1 = jnp.concatenate([params["b_p1"], params["b_q1"]]).reshape(1, HID2)

    wh = jnp.zeros((HID2, HEAD_PAD), jnp.float32)
    wh = wh.at[:, :OUT].set(params["w_q2"])            # [w_q2a; w_q2b] -> q2 cols
    wh = wh.at[:HID, OUT:2 * OUT].set(params["w_p2"])  # [w_p2; 0]      -> p2 cols
    bh = jnp.zeros((1, HEAD_PAD), jnp.float32)
    bh = bh.at[0, :OUT].set(params["b_q2"])
    bh = bh.at[0, OUT:2 * OUT].set(params["b_p2"])

    return (jax.device_put(w1.astype(compute_dtype)),
            jax.device_put(b1.astype(jnp.float32)),
            jax.device_put(wh.astype(compute_dtype)),
            jax.device_put(bh.astype(jnp.float32)))


@functools.partial(jax.jit, static_argnames=("tile_b", "use_bf16"))
def body_model_forward(x, fused_params, *, tile_b=None, use_bf16=True):
    """x: (B, 1024) float32.  fused_params: output of prepare_fused_params.

    Returns (q2, predict2), each (B, 8) float32.
    """
    B = x.shape[0]
    if tile_b is None:
        tile_b = _pick_tile_b(B)

    w1, b1, wh, bh = fused_params
    out_dtype = jnp.bfloat16 if use_bf16 else jnp.float32

    # Pad the batch to a multiple of tile_b (zeros; sliced off afterwards).
    # x stays f32 end-to-end in HBM; the bf16 cast happens inside the kernel.
    B_pad = pl.cdiv(B, tile_b) * tile_b
    x_in = x
    if B_pad != B:
        x_in = jnp.pad(x_in, ((0, B_pad - B), (0, 0)))

    grid = (B_pad // tile_b,)

    def batch_map(i):
        return (i, 0)

    def fixed_map(i):
        return (0, 0)

    out = pl.pallas_call(
        body_model_kernel,
        out_shape=jax.ShapeDtypeStruct((B_pad, HEAD_PAD), out_dtype),
        grid_spec=pltpu.PrefetchScalarGridSpec(
            num_scalar_prefetch=0,
            grid=grid,
            in_specs=[
                pl.BlockSpec((tile_b, IN_DIM), batch_map),     # x (f32)
                pl.BlockSpec((IN_DIM, HID2), fixed_map),       # fused layer-1 weight
                pl.BlockSpec((1, HID2), fixed_map),            # fused layer-1 bias
                pl.BlockSpec((HID2, HEAD_PAD), fixed_map),     # fused head weight
                pl.BlockSpec((1, HEAD_PAD), fixed_map),        # fused head bias
            ],
            out_specs=pl.BlockSpec((tile_b, HEAD_PAD), batch_map),
        ),
        compiler_params=pltpu.CompilerParams(
            dimension_semantics=("parallel",),
            # VMEM footprint at tile_b=1024 is ~13 MiB (double-buffered), well
            # under the default scoped limit on every generation (incl. v7x),
            # so no explicit vmem_limit_bytes is needed.
        ),
    )(x_in, w1, b1, wh, bh)

    q2 = out[:B, :OUT].astype(jnp.float32)
    p2 = out[:B, OUT:2 * OUT].astype(jnp.float32)
    return q2, p2


# --------------------------------------------------------------------------- #
# Reference + test
# --------------------------------------------------------------------------- #
def init_params(key):
    """Deterministic synthetic parameters (shapes match the PyTorch module),
    stored pre-transposed as (in, out)."""
    ks = jax.random.split(key, 8)
    scale = 0.02
    return {
        "w_p1": scale * jax.random.normal(ks[0], (IN_DIM, HID), jnp.float32),
        "b_p1": scale * jax.random.normal(ks[1], (HID,), jnp.float32),
        "w_q1": scale * jax.random.normal(ks[2], (IN_DIM, HID), jnp.float32),
        "b_q1": scale * jax.random.normal(ks[3], (HID,), jnp.float32),
        "w_q2": scale * jax.random.normal(ks[4], (HID2, OUT), jnp.float32),
        "b_q2": scale * jax.random.normal(ks[5], (OUT,), jnp.float32),
        "w_p2": scale * jax.random.normal(ks[6], (HID, OUT), jnp.float32),
        "b_p2": scale * jax.random.normal(ks[7], (OUT,), jnp.float32),
    }


def reference_forward(x, params):
    """Pure-JAX f32 reference of the PyTorch forward, for validation."""
    p1 = jnp.maximum(x @ params["w_p1"] + params["b_p1"], 0.0)
    q1 = jnp.maximum(x @ params["w_q1"] + params["b_q1"], 0.0)
    q2 = jnp.concatenate([p1, q1], axis=-1) @ params["w_q2"] + params["b_q2"]
    p2 = p1 @ params["w_p2"] + params["b_p2"]
    return q2, p2


if __name__ == "__main__":
    key = jax.random.PRNGKey(0)
    k_x, k_p, k_x2 = jax.random.split(key, 3)

    params = init_params(k_p)
    # Fuse/pad/cast weights once (init time), per compute dtype.
    fused_f32 = prepare_fused_params(params, use_bf16=False)
    fused_bf16 = prepare_fused_params(params, use_bf16=True)

    # ---- Small-batch test (single tile, latency path) ----
    B = 8
    x = jax.random.normal(k_x, (B, IN_DIM), jnp.float32)
    q2_ref, p2_ref = reference_forward(x, params)

    # f32 path: exact-math validation (tight tolerance).
    q2_f32, p2_f32 = body_model_forward(x, fused_f32, use_bf16=False)
    q2_f32 = jax.block_until_ready(q2_f32)
    p2_f32 = jax.block_until_ready(p2_f32)
    assert q2_f32.shape == (B, OUT) and p2_f32.shape == (B, OUT)
    assert jnp.allclose(q2_f32, q2_ref, atol=1e-4, rtol=1e-4)
    assert jnp.allclose(p2_f32, p2_ref, atol=1e-4, rtol=1e-4)

    # bf16-operand path (default, fast): looser tolerance vs the f32 reference.
    q2_bf, p2_bf = body_model_forward(x, fused_bf16, use_bf16=True)
    q2_bf = jax.block_until_ready(q2_bf)
    p2_bf = jax.block_until_ready(p2_bf)
    assert q2_bf.shape == (B, OUT) and p2_bf.shape == (B, OUT)
    assert jnp.allclose(q2_bf, q2_ref, atol=2e-2, rtol=2e-2)
    assert jnp.allclose(p2_bf, p2_ref, atol=2e-2, rtol=2e-2)

    # ---- Multi-tile test (exercises batch padding + >1 grid step) ----
    B2 = 300
    x2 = jax.random.normal(k_x2, (B2, IN_DIM), jnp.float32)
    q2_ref2, p2_ref2 = reference_forward(x2, params)
    q2_t, p2_t = body_model_forward(x2, fused_bf16, use_bf16=True)
    q2_t = jax.block_until_ready(q2_t)
    p2_t = jax.block_until_ready(p2_t)
    assert q2_t.shape == (B2, OUT) and p2_t.shape == (B2, OUT)
    assert jnp.allclose(q2_t, q2_ref2, atol=2e-2, rtol=2e-2)
    assert jnp.allclose(p2_t, p2_ref2, atol=2e-2, rtol=2e-2)

    print("KERNEL_OK")
</pallas_src>

<mosaic_0001>
module attributes {stable_mosaic.version = 11 : i64} {
  func.func @body_model_kernel(%arg0: i32, %arg1: memref<16x1024xf32, #tpu.memory_space<vmem>>, %arg2: memref<1024x512xf32, #tpu.memory_space<vmem>>, %arg3: memref<1x512xf32, #tpu.memory_space<vmem>>, %arg4: memref<512x128xf32, #tpu.memory_space<vmem>>, %arg5: memref<1x128xf32, #tpu.memory_space<vmem>>, %arg6: memref<16x128xf32, #tpu.memory_space<vmem>>) attributes {dimension_semantics = [#tpu.dimension_semantics<parallel>], iteration_bounds = array<i64: 1>, scalar_prefetch = 0 : i64, scratch_operands = 0 : i64, tpu.core_type = #tpu.core_type<tc>, window_params = [{transform_indices = @transform_0, window_bounds = array<i64: 16, 1024>}, {pipeline_mode = #tpu.pipeline_mode<synchronous>, transform_indices = @transform_1, window_bounds = array<i64: 1024, 512>}, {pipeline_mode = #tpu.pipeline_mode<synchronous>, transform_indices = @transform_2, window_bounds = array<i64: 1, 512>}, {pipeline_mode = #tpu.pipeline_mode<synchronous>, transform_indices = @transform_3, window_bounds = array<i64: 512, 128>}, {pipeline_mode = #tpu.pipeline_mode<synchronous>, transform_indices = @transform_4, window_bounds = array<i64: 1, 128>}, {transform_indices = @transform_5, window_bounds = array<i64: 16, 128>}]} {
    %c0 = arith.constant 0 : index
    %c0_0 = arith.constant 0 : index
    %0 = vector.load %arg1[%c0, %c0_0] : memref<16x1024xf32, #tpu.memory_space<vmem>>, vector<16x1024xf32>
    %c0_1 = arith.constant 0 : index
    %c0_2 = arith.constant 0 : index
    %1 = vector.load %arg2[%c0_1, %c0_2] : memref<1024x512xf32, #tpu.memory_space<vmem>>, vector<1024x512xf32>
    %cst = arith.constant dense<0.000000e+00> : vector<16x512xf32>
    %2 = tpu.matmul %0, %1, %cst {dimension_numbers = #tpu.dot_dimension_numbers<[1], [0], [0], [1], [0, 0, 1, 1], [], []>} : vector<16x1024xf32>, vector<1024x512xf32>, vector<16x512xf32> -> vector<16x512xf32>
    %c0_3 = arith.constant 0 : index
    %c0_4 = arith.constant 0 : index
    %3 = vector.load %arg3[%c0_3, %c0_4] : memref<1x512xf32, #tpu.memory_space<vmem>>, vector<1x512xf32>
    %4 = vector.broadcast %3 : vector<1x512xf32> to vector<16x512xf32>
    %5 = arith.addf %2, %4 : vector<16x512xf32>
    %cst_5 = arith.constant 0.000000e+00 : f32
    %6 = vector.broadcast %cst_5 : f32 to vector<16x512xf32>
    %7 = arith.maximumf %5, %6 : vector<16x512xf32>
    %c0_6 = arith.constant 0 : index
    %c0_7 = arith.constant 0 : index
    %8 = vector.load %arg4[%c0_6, %c0_7] : memref<512x128xf32, #tpu.memory_space<vmem>>, vector<512x128xf32>
    %cst_8 = arith.constant dense<0.000000e+00> : vector<16x128xf32>
    %9 = tpu.matmul %7, %8, %cst_8 {dimension_numbers = #tpu.dot_dimension_numbers<[1], [0], [0], [1], [0, 0, 1, 1], [], []>} : vector<16x512xf32>, vector<512x128xf32>, vector<16x128xf32> -> vector<16x128xf32>
    %c0_9 = arith.constant 0 : index
    %c0_10 = arith.constant 0 : index
    %10 = vector.load %arg5[%c0_9, %c0_10] : memref<1x128xf32, #tpu.memory_space<vmem>>, vector<1x128xf32>
    %11 = vector.broadcast %10 : vector<1x128xf32> to vector<16x128xf32>
    %12 = arith.addf %9, %11 : vector<16x128xf32>
    %c0_11 = arith.constant 0 : index
    %c0_12 = arith.constant 0 : index
    %13 = vector.load %arg6[%c0_11, %c0_12] : memref<16x128xf32, #tpu.memory_space<vmem>>, vector<16x128xf32>
    tpu.vector_store %arg6[%c0_11, %c0_12], %12 {strides = array<i32>} : memref<16x128xf32, #tpu.memory_space<vmem>>, vector<16x128xf32>,
    return
  }
  func.func @transform_0(%arg0: i32) -> (i32, i32) {
    %c0_i32 = arith.constant 0 : i32
    %c0_i32_0 = arith.constant 0 : i32
    return %arg0, %c0_i32 : i32, i32
  }
  func.func @transform_1(%arg0: i32) -> (i32, i32) {
    %c0_i32 = arith.constant 0 : i32
    %c0_i32_0 = arith.constant 0 : i32
    %c0_i32_1 = arith.constant 0 : i32
    return %c0_i32, %c0_i32_0 : i32, i32
  }
  func.func @transform_2(%arg0: i32) -> (i32, i32) {
    %c0_i32 = arith.constant 0 : i32
    %c0_i32_0 = arith.constant 0 : i32
    %c0_i32_1 = arith.constant 0 : i32
    return %c0_i32, %c0_i32_0 : i32, i32
  }
  func.func @transform_3(%arg0: i32) -> (i32, i32) {
    %c0_i32 = arith.constant 0 : i32
    %c0_i32_0 = arith.constant 0 : i32
    %c0_i32_1 = arith.constant 0 : i32
    return %c0_i32, %c0_i32_0 : i32, i32
  }
  func.func @transform_4(%arg0: i32) -> (i32, i32) {
    %c0_i32 = arith.constant 0 : i32
    %c0_i32_0 = arith.constant 0 : i32
    %c0_i32_1 = arith.constant 0 : i32
    return %c0_i32, %c0_i32_0 : i32, i32
  }
  func.func @transform_5(%arg0: i32) -> (i32, i32) {
    %c0_i32 = arith.constant 0 : i32
    %c0_i32_0 = arith.constant 0 : i32
    return %arg0, %c0_i32 : i32, i32
  }
}

</mosaic_0001>

<llo_original>
// kernel: body_model_forward.1
$region0: #{body_model_forward.1}
  #allocation0 [shape = 'u32[]', space=smem, size = 0x4, offset = 0x4, fixed_abs, tag = 'smem constant byte address 0x4 - core index']
  #allocation1 [shape = 'u32[144,128]{1,0:T(1,128)}', space=vmem, size = 0x12000, scoped, tag = 'internal scratch']
  %s0 = inlined_call_operand.vmem [shape: f32[16,1024], index: 0, kind: input, shape index: {}]
  %s1 = inlined_call_operand.hbm [shape: f32[1024,512], index: 1, kind: input, shape index: {}]
  %s2 = inlined_call_operand.hbm [shape: f32[1,512], index: 2, kind: input, shape index: {}]
  %s3 = inlined_call_operand.hbm [shape: f32[512,128], index: 3, kind: input, shape index: {}]
  %s4 = inlined_call_operand.hbm [shape: f32[1,128], index: 4, kind: input, shape index: {}]
  %s5 = inlined_call_operand.vmem [shape: f32[16,128], index: 5, kind: output, shape index: {}]
  %s6 = sld [smem:[#allocation0]]
  $region46: #{body_model_forward.1} parent=0
    _
  %s8 = ssub.s32 1, %s6
  %s9 = scalar_select 0, %s8, %s6
  $region1: #{body_model_forward.1} parent=0
    #allocation2 [shape = 'u8[2097152]{0}', space=vmem, size = 0x200000, scoped, tag = 'input window, operand 1, single buffered']
    #allocation3 [shape = 's32[1]{0}', space=sflag, size = 0x4, scoped, tag = 'scoped memory for body_model_forward.1']
    #allocation4 [shape = 'u8[2048]{0}', space=vmem, size = 0x800, scoped, tag = 'input window, operand 2, single buffered']
    #allocation5 [shape = 's32[1]{0}', space=sflag, size = 0x4, scoped, tag = 'scoped memory for body_model_forward.1']
    #allocation6 [shape = 'u8[262144]{0}', space=vmem, size = 0x40000, scoped, tag = 'input window, operand 3, single buffered']
    #allocation7 [shape = 'u8[512]{0}', space=vmem, size = 0x400, scoped, tag = 'input window, operand 4, single buffered']
    #allocation8 [shape = 's32[1]{0}', space=sflag, size = 0x4, scoped, tag = 'scoped memory for body_model_forward.1']
    %10 = vsyncpa [#allocation3], 0
    %11 = vsyncpa [#allocation5], 0
    %12 = vsyncpa [#allocation8], 0
    // Predicated region
    $region2: #{body_model_forward.1} parent=1 // pred_check
      _
    $region3: #{body_model_forward.1} parent=1 // pred_check_branch
      %14 = sbr.rel (0) target = $region5
    $region4: #{body_model_forward.1} parent=1 // pred_region
      _
    $region5: #{body_model_forward.1} parent=1 // pred_fallthru
      _
    // Predicated region
    $region6: #{body_model_forward.1} parent=1 // pred_check
      _
    $region7: #{body_model_forward.1} parent=1 // pred_check_branch
      %16 = sbr.rel (0) target = $region9
    $region8: #{body_model_forward.1} parent=1 // pred_region
      %s18 = ssub.s32 65536, 65536
      %19 = vsyncadd [#allocation3], %s18
      %s20 = sshll.u32 [#allocation2], 4
      %s21 = int_to_ptr.vmem [resolvable:$true] %s20
      %26 = dma.hbm_to_vmem [thread:$0]  %s1, 65536, %s21, [#allocation3], 512, 512, 32
    $region9: #{body_model_forward.1} parent=1 // pred_fallthru
      _
    // Predicated region
    $region10: #{body_model_forward.1} parent=1 // pred_check
      _
    $region11: #{body_model_forward.1} parent=1 // pred_check_branch
      %28 = sbr.rel (0) target = $region13
    $region12: #{body_model_forward.1} parent=1 // pred_region
      %s30 = ssub.s32 64, 64
      %31 = vsyncadd [#allocation5], %s30
      %s33 = sshll.u32 [#allocation4], 4
      %s34 = int_to_ptr.vmem [resolvable:$true] %s33
      %36 = dma.hbm_to_vmem [thread:$0]  %s2, 64, %s34, [#allocation5]
    $region13: #{body_model_forward.1} parent=1 // pred_fallthru
      _
    // Predicated region
    $region14: #{body_model_forward.1} parent=1 // pred_check
      _
    $region15: #{body_model_forward.1} parent=1 // pred_check_branch
      %38 = sbr.rel (0) target = $region17
    $region16: #{body_model_forward.1} parent=1 // pred_region
      %s40 = ssub.s32 8192, 8192
      %41 = vsyncadd [#allocation5], %s40
      %s42 = sshll.u32 [#allocation6], 4
      %s43 = int_to_ptr.vmem [resolvable:$true] %s42
      %48 = dma.hbm_to_vmem [thread:$0]  %s3, 8192, %s43, [#allocation5], 128, 128, 8
    $region17: #{body_model_forward.1} parent=1 // pred_fallthru
      _
    // Predicated region
    $region18: #{body_model_forward.1} parent=1 // pred_check
      _
    $region19: #{body_model_forward.1} parent=1 // pred_check_branch
      %50 = sbr.rel (0) target = $region21
    $region20: #{body_model_forward.1} parent=1 // pred_region
      %s52 = ssub.s32 16, 16
      %53 = vsyncadd [#allocation8], %s52
      %s55 = sshll.u32 [#allocation7], 4
      %s56 = int_to_ptr.vmem [resolvable:$true] %s55
      %58 = dma.hbm_to_vmem [thread:$0]  %s4, 16, %s56, [#allocation8]
    $region21: #{body_model_forward.1} parent=1 // pred_fallthru
      _
    // Predicated region
    $region22: #{body_model_forward.1} parent=1 // pred_check
      _
    $region23: #{body_model_forward.1} parent=1 // pred_check_branch
      %60 = sbr.rel (0) target = $region25
    $region24: #{body_model_forward.1} parent=1 // pred_region
      %61 = dma.done [#allocation3], 65536
    $region25: #{body_model_forward.1} parent=1 // pred_fallthru
      _
    // Predicated region
    $region26: #{body_model_forward.1} parent=1 // pred_check
      _
    $region27: #{body_model_forward.1} parent=1 // pred_check_branch
      %63 = sbr.rel (0) target = $region29
    $region28: #{body_model_forward.1} parent=1 // pred_region
      %64 = dma.done [#allocation5], 64
    $region29: #{body_model_forward.1} parent=1 // pred_fallthru
      _
    // Predicated region
    $region30: #{body_model_forward.1} parent=1 // pred_check
      _
    $region31: #{body_model_forward.1} parent=1 // pred_check_branch
      %66 = sbr.rel (0) target = $region33
    $region32: #{body_model_forward.1} parent=1 // pred_region
      %67 = dma.done [#allocation5], 8192
    $region33: #{body_model_forward.1} parent=1 // pred_fallthru
      _
    // Predicated region
    $region34: #{body_model_forward.1} parent=1 // pred_check
      _
    $region35: #{body_model_forward.1} parent=1 // pred_check_branch
      %69 = sbr.rel (0) target = $region37
    $region36: #{body_model_forward.1} parent=1 // pred_region
      %70 = dma.done [#allocation8], 16
    $region37: #{body_model_forward.1} parent=1 // pred_fallthru
      _
    %v71 = vld [vmem:[%s0] sm:$0xff]
    %v72 = vld [vmem:[%s0 + $0x8] sm:$0xff]
    %v73 = vld [vmem:[%s0 + $0x10] sm:$0xff]
    %v74 = vld [vmem:[%s0 + $0x18] sm:$0xff]
    %v75 = vld [vmem:[%s0 + $0x20] sm:$0xff]
    %v76 = vld [vmem:[%s0 + $0x28] sm:$0xff]
    %v77 = vld [vmem:[%s0 + $0x30] sm:$0xff]
    %v78 = vld [vmem:[%s0 + $0x38] sm:$0xff]
    %v79 = vld [vmem:[%s0 + $0x40] sm:$0xff]
    %v80 = vld [vmem:[%s0 + $0x48] sm:$0xff]
    %v81 = vld [vmem:[%s0 + $0x50] sm:$0xff]
    %v82 = vld [vmem:[%s0 + $0x58] sm:$0xff]
    %v83 = vld [vmem:[%s0 + $0x60] sm:$0xff]
    %v84 = vld [vmem:[%s0 + $0x68] sm:$0xff]
    %v85 = vld [vmem:[%s0 + $0x70] sm:$0xff]
    %v86 = vld [vmem:[%s0 + $0x78] sm:$0xff]
    %v87 = vld [vmem:[#allocation2] sm:$0xff]
    %v88 = vld [vmem:[#allocation2 + $0x8] sm:$0xff]
    %v89 = vld [vmem:[#allocation2 + $0x10] sm:$0xff]
    %v90 = vld [vmem:[#allocation2 + $0x18] sm:$0xff]
    %v91 = vld [vmem:[#allocation2 + $0x20] sm:$0xff]
    %v92 = vld [vmem:[#allocation2 + $0x28] sm:$0xff]
    %v93 = vld [vmem:[#allocation2 + $0x30] sm:$0xff]
    %v94 = vld [vmem:[#allocation2 + $0x38] sm:$0xff]
    %v95 = vld [vmem:[#allocation2 + $0x40] sm:$0xff]
    %v96 = vld [vmem:[#allocation2 + $0x48] sm:$0xff]
    %v97 = vld [vmem:[#allocation2 + $0x50] sm:$0xff]
    %v98 = vld [vmem:[#allocation2 + $0x58] sm:$0xff]
    %v99 = vld [vmem:[#allocation2 + $0x60] sm:$0xff]
    %v100 = vld [vmem:[#allocation2 + $0x68] sm:$0xff]
    %v101 = vld [vmem:[#allocation2 + $0x70] sm:$0xff]
    %v102 = vld [vmem:[#allocation2 + $0x78] sm:$0xff]
    %v103 = vld [vmem:[#allocation2 + $0x80] sm:$0xff]
    %v104 = vld [vmem:[#allocation2 + $0x88] sm:$0xff]
    %v105 = vld [vmem:[#allocation2 + $0x90] sm:$0xff]
    %v106 = vld [vmem:[#allocation2 + $0x98] sm:$0xff]
    %v107 = vld [vmem:[#allocation2 + $0xa0] sm:$0xff]
    %v108 = vld [vmem:[#allocation2 + $0xa8] sm:$0xff]
    %v109 = vld [vmem:[#allocation2 + $0xb0] sm:$0xff]
    %v110 = vld [vmem:[#allocation2 + $0xb8] sm:$0xff]
    %v111 = vld [vmem:[#allocation2 + $0xc0] sm:$0xff]
    %v112 = vld [vmem:[#allocation2 + $0xc8] sm:$0xff]
    %v113 = vld [vmem:[#allocation2 + $0xd0] sm:$0xff]
    %v114 = vld [vmem:[#allocation2 + $0xd8] sm:$0xff]
    %v115 = vld [vmem:[#allocation2 + $0xe0] sm:$0xff]
    %v116 = vld [vmem:[#allocation2 + $0xe8] sm:$0xff]
    %v117 = vld [vmem:[#allocation2 + $0xf0] sm:$0xff]
    %v118 = vld [vmem:[#allocation2 + $0xf8] sm:$0xff]
    %v119 = vld [vmem:[#allocation2 + $0x100] sm:$0xff]
    %v120 = vld [vmem:[#allocation2 + $0x108] sm:$0xff]
    %v121 = vld [vmem:[#allocation2 + $0x110] sm:$0xff]
    %v122 = vld [vmem:[#allocation2 + $0x118] sm:$0xff]
    %v123 = vld [vmem:[#allocation2 + $0x120] sm:$0xff]
    %v124 = vld [vmem:[#allocation2 + $0x128] sm:$0xff]
    %v125 = vld [vmem:[#allocation2 + $0x130] sm:$0xff]
    %v126 = vld [vmem:[#allocation2 + $0x138] sm:$0xff]
    %v127 = vld [vmem:[#allocation2 + $0x140] sm:$0xff]
    %v128 = vld [vmem:[#allocation2 + $0x148] sm:$0xff]
    %v129 = vld [vmem:[#allocation2 + $0x150] sm:$0xff]
    %v130 = vld [vmem:[#allocation2 + $0x158] sm:$0xff]
    %v131 = vld [vmem:[#allocation2 + $0x160] sm:$0xff]
    %v132 = vld [vmem:[#allocation2 + $0x168] sm:$0xff]
    %v133 = vld [vmem:[#allocation2 + $0x170] sm:$0xff]
    %v134 = vld [vmem:[#allocation2 + $0x178] sm:$0xff]
    %v135 = vld [vmem:[#allocation2 + $0x180] sm:$0xff]
    %v136 = vld [vmem:[#allocation2 + $0x188] sm:$0xff]
    %v137 = vld [vmem:[#allocation2 + $0x190] sm:$0xff]
    %v138 = vld [vmem:[#allocation2 + $0x198] sm:$0xff]
    %v139 = vld [vmem:[#allocation2 + $0x1a0] sm:$0xff]
    %v140 = vld [vmem:[#allocation2 + $0x1a8] sm:$0xff]
    %v141 = vld [vmem:[#allocation2 + $0x1b0] sm:$0xff]
    %v142 = vld [vmem:[#allocation2 + $0x1b8] sm:$0xff]
    %v143 = vld [vmem:[#allocation2 + $0x1c0] sm:$0xff]
    %v144 = vld [vmem:[#allocation2 + $0x1c8] sm:$0xff]
    %v145 = vld [vmem:[#allocation2 + $0x1d0] sm:$0xff]
    %v146 = vld [vmem:[#allocation2 + $0x1d8] sm:$0xff]
    %v147 = vld [vmem:[#allocation2 + $0x1e0] sm:$0xff]
    %v148 = vld [vmem:[#allocation2 + $0x1e8] sm:$0xff]
    %v149 = vld [vmem:[#allocation2 + $0x1f0] sm:$0xff]
    %v150 = vld [vmem:[#allocation2 + $0x1f8] sm:$0xff]
    %v151 = vld [vmem:[#allocation2 + $0x200] sm:$0xff]
    %v152 = vld [vmem:[#allocation2 + $0x208] sm:$0xff]
    %v153 = vld [vmem:[#allocation2 + $0x210] sm:$0xff]
    %v154 = vld [vmem:[#allocation2 + $0x218] sm:$0xff]
    %v155 = vld [vmem:[#allocation2 + $0x220] sm:$0xff]
    %v156 = vld [vmem:[#allocation2 + $0x228] sm:$0xff]
    %v157 = vld [vmem:[#allocation2 + $0x230] sm:$0xff]
    %v158 = vld [vmem:[#allocation2 + $0x238] sm:$0xff]
    %v159 = vld [vmem:[#allocation2 + $0x240] sm:$0xff]
    %v160 = vld [vmem:[#allocation2 + $0x248] sm:$0xff]
    %v161 = vld [vmem:[#allocation2 + $0x250] sm:$0xff]
    %v162 = vld [vmem:[#allocation2 + $0x258] sm:$0xff]
    %v163 = vld [vmem:[#allocation2 + $0x260] sm:$0xff]
    %v164 = vld [vmem:[#allocation2 + $0x268] sm:$0xff]
    %v165 = vld [vmem:[#allocation2 + $0x270] sm:$0xff]
    %v166 = vld [vmem:[#allocation2 + $0x278] sm:$0xff]
    %v167 = vld [vmem:[#allocation2 + $0x280] sm:$0xff]
    %v168 = vld [vmem:[#allocation2 + $0x288] sm:$0xff]
    %v169 = vld [vmem:[#allocation2 + $0x290] sm:$0xff]
    %v170 = vld [vmem:[#allocation2 + $0x298] sm:$0xff]
    %v171 = vld [vmem:[#allocation2 + $0x2a0] sm:$0xff]
    %v172 = vld [vmem:[#allocation2 + $0x2a8] sm:$0xff]
    %v173 = vld [vmem:[#allocation2 + $0x2b0] sm:$0xff]
    %v174 = vld [vmem:[#allocation2 + $0x2b8] sm:$0xff]
    %v175 = vld [vmem:[#allocation2 + $0x2c0] sm:$0xff]
    %v176 = vld [vmem:[#allocation2 + $0x2c8] sm:$0xff]
    %v177 = vld [vmem:[#allocation2 + $0x2d0] sm:$0xff]
    %v178 = vld [vmem:[#allocation2 + $0x2d8] sm:$0xff]
    %v179 = vld [vmem:[#allocation2 + $0x2e0] sm:$0xff]
    %v180 = vld [vmem:[#allocation2 + $0x2e8] sm:$0xff]
    %v181 = vld [vmem:[#allocation2 + $0x2f0] sm:$0xff]
    %v182 = vld [vmem:[#allocation2 + $0x2f8] sm:$0xff]
    %v183 = vld [vmem:[#allocation2 + $0x300] sm:$0xff]
    %v184 = vld [vmem:[#allocation2 + $0x308] sm:$0xff]
    %v185 = vld [vmem:[#allocation2 + $0x310] sm:$0xff]
    %v186 = vld [vmem:[#allocation2 + $0x318] sm:$0xff]
    %v187 = vld [vmem:[#allocation2 + $0x320] sm:$0xff]
    %v188 = vld [vmem:[#allocation2 + $0x328] sm:$0xff]
    %v189 = vld [vmem:[#allocation2 + $0x330] sm:$0xff]
    %v190 = vld [vmem:[#allocation2 + $0x338] sm:$0xff]
    %v191 = vld [vmem:[#allocation2 + $0x340] sm:$0xff]
    %v192 = vld [vmem:[#allocation2 + $0x348] sm:$0xff]
    %v193 = vld [vmem:[#allocation2 + $0x350] sm:$0xff]
    %v194 = vld [vmem:[#allocation2 + $0x358] sm:$0xff]
    %v195 = vld [vmem:[#allocation2 + $0x360] sm:$0xff]
    %v196 = vld [vmem:[#allocation2 + $0x368] sm:$0xff]
    %v197 = vld [vmem:[#allocation2 + $0x370] sm:$0xff]
    %v198 = vld [vmem:[#allocation2 + $0x378] sm:$0xff]
    %v199 = vld [vmem:[#allocation2 + $0x380] sm:$0xff]
    %v200 = vld [vmem:[#allocation2 + $0x388] sm:$0xff]
    %v201 = vld [vmem:[#allocation2 + $0x390] sm:$0xff]
    %v202 = vld [vmem:[#allocation2 + $0x398] sm:$0xff]
    %v203 = vld [vmem:[#allocation2 + $0x3a0] sm:$0xff]
    %v204 = vld [vmem:[#allocation2 + $0x3a8] sm:$0xff]
    %v205 = vld [vmem:[#allocation2 + $0x3b0] sm:$0xff]
    %v206 = vld [vmem:[#allocation2 + $0x3b8] sm:$0xff]
    %v207 = vld [vmem:[#allocation2 + $0x3c0] sm:$0xff]
    %v208 = vld [vmem:[#allocation2 + $0x3c8] sm:$0xff]
    %v209 = vld [vmem:[#allocation2 + $0x3d0] sm:$0xff]
    %v210 = vld [vmem:[#allocation2 + $0x3d8] sm:$0xff]
    %v211 = vld [vmem:[#allocation2 + $0x3e0] sm:$0xff]
    %v212 = vld [vmem:[#allocation2 + $0x3e8] sm:$0xff]
    %v213 = vld [vmem:[#allocation2 + $0x3f0] sm:$0xff]
    %v214 = vld [vmem:[#allocation2 + $0x3f8] sm:$0xff]
    %v215 = vld [vmem:[#allocation2 + $0x400] sm:$0xff]
    %v216 = vld [vmem:[#allocation2 + $0x408] sm:$0xff]
    %v217 = vld [vmem:[#allocation2 + $0x410] sm:$0xff]
    %v218 = vld [vmem:[#allocation2 + $0x418] sm:$0xff]
    %v219 = vld [vmem:[#allocation2 + $0x420] sm:$0xff]
    %v220 = vld [vmem:[#allocation2 + $0x428] sm:$0xff]
    %v221 = vld [vmem:[#allocation2 + $0x430] sm:$0xff]
    %v222 = vld [vmem:[#allocation2 + $0x438] sm:$0xff]
    %v223 = vld [vmem:[#allocation2 + $0x440] sm:$0xff]
    %v224 = vld [vmem:[#allocation2 + $0x448] sm:$0xff]
    %v225 = vld [vmem:[#allocation2 + $0x450] sm:$0xff]
    %v226 = vld [vmem:[#allocation2 + $0x458] sm:$0xff]
    %v227 = vld [vmem:[#allocation2 + $0x460] sm:$0xff]
    %v228 = vld [vmem:[#allocation2 + $0x468] sm:$0xff]
    %v229 = vld [vmem:[#allocation2 + $0x470] sm:$0xff]
    %v230 = vld [vmem:[#allocation2 + $0x478] sm:$0xff]
    %v231 = vld [vmem:[#allocation2 + $0x480] sm:$0xff]
    %v232 = vld [vmem:[#allocation2 + $0x488] sm:$0xff]
    %v233 = vld [vmem:[#allocation2 + $0x490] sm:$0xff]
    %v234 = vld [vmem:[#allocation2 + $0x498] sm:$0xff]
    %v235 = vld [vmem:[#allocation2 + $0x4a0] sm:$0xff]
    %v236 = vld [vmem:[#allocation2 + $0x4a8] sm:$0xff]
    %v237 = vld [vmem:[#allocation2 + $0x4b0] sm:$0xff]
    %v238 = vld [vmem:[#allocation2 + $0x4b8] sm:$0xff]
    %v239 = vld [vmem:[#allocation2 + $0x4c0] sm:$0xff]
    %v240 = vld [vmem:[#allocation2 + $0x4c8] sm:$0xff]
    %v241 = vld [vmem:[#allocation2 + $0x4d0] sm:$0xff]
    %v242 = vld [vmem:[#allocation2 + $0x4d8] sm:$0xff]
    %v243 = vld [vmem:[#allocation2 + $0x4e0] sm:$0xff]
    %v244 = vld [vmem:[#allocation2 + $0x4e8] sm:$0xff]
    %v245 = vld [vmem:[#allocation2 + $0x4f0] sm:$0xff]
    %v246 = vld [vmem:[#allocation2 + $0x4f8] sm:$0xff]
    %v247 = vld [vmem:[#allocation2 + $0x500] sm:$0xff]
    %v248 = vld [vmem:[#allocation2 + $0x508] sm:$0xff]
    %v249 = vld [vmem:[#allocation2 + $0x510] sm:$0xff]
    %v250 = vld [vmem:[#allocation2 + $0x518] sm:$0xff]
    %v251 = vld [vmem:[#allocation2 + $0x520] sm:$0xff]
    %v252 = vld [vmem:[#allocation2 + $0x528] sm:$0xff]
    %v253 = vld [vmem:[#allocation2 + $0x530] sm:$0xff]
    %v254 = vld [vmem:[#allocation2 + $0x538] sm:$0xff]
    %v255 = vld [vmem:[#allocation2 + $0x540] sm:$0xff]
    %v256 = vld [vmem:[#allocation2 + $0x548] sm:$0xff]
    %v257 = vld [vmem:[#allocation2 + $0x550] sm:$0xff]
    %v258 = vld [vmem:[#allocation2 + $0x558] sm:$0xff]
    %v259 = vld [vmem:[#allocation2 + $0x560] sm:$0xff]
    %v260 = vld [vmem:[#allocation2 + $0x568] sm:$0xff]
    %v261 = vld [vmem:[#allocation2 + $0x570] sm:$0xff]
    %v262 = vld [vmem:[#allocation2 + $0x578] sm:$0xff]
    %v263 = vld [vmem:[#allocation2 + $0x580] sm:$0xff]
    %v264 = vld [vmem:[#allocation2 + $0x588] sm:$0xff]
    %v265 = vld [vmem:[#allocation2 + $0x590] sm:$0xff]
    %v266 = vld [vmem:[#allocation2 + $0x598] sm:$0xff]
    %v267 = vld [vmem:[#allocation2 + $0x5a0] sm:$0xff]
    %v268 = vld [vmem:[#allocation2 + $0x5a8] sm:$0xff]
    %v269 = vld [vmem:[#allocation2 + $0x5b0] sm:$0xff]
    %v270 = vld [vmem:[#allocation2 + $0x5b8] sm:$0xff]
    %v271 = vld [vmem:[#allocation2 + $0x5c0] sm:$0xff]
    %v272 = vld [vmem:[#allocation2 + $0x5c8] sm:$0xff]
    %v273 = vld [vmem:[#allocation2 + $0x5d0] sm:$0xff]
    %v274 = vld [vmem:[#allocation2 + $0x5d8] sm:$0xff]
    %v275 = vld [vmem:[#allocation2 + $0x5e0] sm:$0xff]
    %v276 = vld [vmem:[#allocation2 + $0x5e8] sm:$0xff]
    %v277 = vld [vmem:[#allocation2 + $0x5f0] sm:$0xff]
    %v278 = vld [vmem:[#allocation2 + $0x5f8] sm:$0xff]
    %v279 = vld [vmem:[#allocation2 + $0x600] sm:$0xff]
    %v280 = vld [vmem:[#allocation2 + $0x608] sm:$0xff]
    %v281 = vld [vmem:[#allocation2 + $0x610] sm:$0xff]
    %v282 = vld [vmem:[#allocation2 + $0x618] sm:$0xff]
    %v283 = vld [vmem:[#allocation2 + $0x620] sm:$0xff]
    %v284 = vld [vmem:[#allocation2 + $0x628] sm:$0xff]
    %v285 = vld [vmem:[#allocation2 + $0x630] sm:$0xff]
    %v286 = vld [vmem:[#allocation2 + $0x638] sm:$0xff]
    %v287 = vld [vmem:[#allocation2 + $0x640] sm:$0xff]
    %v288 = vld [vmem:[#allocation2 + $0x648] sm:$0xff]
    %v289 = vld [vmem:[#allocation2 + $0x650] sm:$0xff]
    %v290 = vld [vmem:[#allocation2 + $0x658] sm:$0xff]
    %v291 = vld [vmem:[#allocation2 + $0x660] sm:$0xff]
    %v292 = vld [vmem:[#allocation2 + $0x668] sm:$0xff]
    %v293 = vld [vmem:[#allocation2 + $0x670] sm:$0xff]
    %v294 = vld [vmem:[#allocation2 + $0x678] sm:$0xff]
    %v295 = vld [vmem:[#allocation2 + $0x680] sm:$0xff]
    %v296 = vld [vmem:[#allocation2 + $0x688] sm:$0xff]
    %v297 = vld [vmem:[#allocation2 + $0x690] sm:$0xff]
    %v298 = vld [vmem:[#allocation2 + $0x698] sm:$0xff]
    %v299 = vld [vmem:[#allocation2 + $0x6a0] sm:$0xff]
    %v300 = vld [vmem:[#allocation2 + $0x6a8] sm:$0xff]
    %v301 = vld [vmem:[#allocation2 + $0x6b0] sm:$0xff]
    %v302 = vld [vmem:[#allocation2 + $0x6b8] sm:$0xff]
    %v303 = vld [vmem:[#allocation2 + $0x6c0] sm:$0xff]
    %v304 = vld [vmem:[#allocation2 + $0x6c8] sm:$0xff]
    %v305 = vld [vmem:[#allocation2 + $0x6d0] sm:$0xff]
    %v306 = vld [vmem:[#allocation2 + $0x6d8] sm:$0xff]
    %v307 = vld [vmem:[#allocation2 + $0x6e0] sm:$0xff]
    %v308 = vld [vmem:[#allocation2 + $0x6e8] sm:$0xff]
    %v309 = vld [vmem:[#allocation2 + $0x6f0] sm:$0xff]
    %v310 = vld [vmem:[#allocation2 + $0x6f8] sm:$0xff]
    %v311 = vld [vmem:[#allocation2 + $0x700] sm:$0xff]
    %v312 = vld [vmem:[#allocation2 + $0x708] sm:$0xff]
    %v313 = vld [vmem:[#allocation2 + $0x710] sm:$0xff]
    %v314 = vld [vmem:[#allocation2 + $0x718] sm:$0xff]
    %v315 = vld [vmem:[#allocation2 + $0x720] sm:$0xff]
    %v316 = vld [vmem:[#allocation2 + $0x728] sm:$0xff]
    %v317 = vld [vmem:[#allocation2 + $0x730] sm:$0xff]
    %v318 = vld [vmem:[#allocation2 + $0x738] sm:$0xff]
    %v319 = vld [vmem:[#allocation2 + $0x740] sm:$0xff]
    %v320 = vld [vmem:[#allocation2 + $0x748] sm:$0xff]
    %v321 = vld [vmem:[#allocation2 + $0x750] sm:$0xff]
    %v322 = vld [vmem:[#allocation2 + $0x758] sm:$0xff]
    %v323 = vld [vmem:[#allocation2 + $0x760] sm:$0xff]
    %v324 = vld [vmem:[#allocation2 + $0x768] sm:$0xff]
    %v325 = vld [vmem:[#allocation2 + $0x770] sm:$0xff]
    %v326 = vld [vmem:[#allocation2 + $0x778] sm:$0xff]
    %v327 = vld [vmem:[#allocation2 + $0x780] sm:$0xff]
    %v328 = vld [vmem:[#allocation2 + $0x788] sm:$0xff]
    %v329 = vld [vmem:[#allocation2 + $0x790] sm:$0xff]
    %v330 = vld [vmem:[#allocation2 + $0x798] sm:$0xff]
    %v331 = vld [vmem:[#allocation2 + $0x7a0] sm:$0xff]
    %v332 = vld [vmem:[#allocation2 + $0x7a8] sm:$0xff]
    %v333 = vld [vmem:[#allocation2 + $0x7b0] sm:$0xff]
    %v334 = vld [vmem:[#allocation2 + $0x7b8] sm:$0xff]
    %v335 = vld [vmem:[#allocation2 + $0x7c0] sm:$0xff]
    %v336 = vld [vmem:[#allocation2 + $0x7c8] sm:$0xff]
    %v337 = vld [vmem:[#allocation2 + $0x7d0] sm:$0xff]
    %v338 = vld [vmem:[#allocation2 + $0x7d8] sm:$0xff]
    %v339 = vld [vmem:[#allocation2 + $0x7e0] sm:$0xff]
    %v340 = vld [vmem:[#allocation2 + $0x7e8] sm:$0xff]
    %v341 = vld [vmem:[#allocation2 + $0x7f0] sm:$0xff]
    %v342 = vld [vmem:[#allocation2 + $0x7f8] sm:$0xff]
    %v343 = vld [vmem:[#allocation2 + $0x800] sm:$0xff]
    %v344 = vld [vmem:[#allocation2 + $0x808] sm:$0xff]
    %v345 = vld [vmem:[#allocation2 + $0x810] sm:$0xff]
    %v346 = vld [vmem:[#allocation2 + $0x818] sm:$0xff]
    %v347 = vld [vmem:[#allocation2 + $0x820] sm:$0xff]
    %v348 = vld [vmem:[#allocation2 + $0x828] sm:$0xff]
    %v349 = vld [vmem:[#allocation2 + $0x830] sm:$0xff]
    %v350 = vld [vmem:[#allocation2 + $0x838] sm:$0xff]
    %v351 = vld [vmem:[#allocation2 + $0x840] sm:$0xff]
    %v352 = vld [vmem:[#allocation2 + $0x848] sm:$0xff]
    %v353 = vld [vmem:[#allocation2 + $0x850] sm:$0xff]
    %v354 = vld [vmem:[#allocation2 + $0x858] sm:$0xff]
    %v355 = vld [vmem:[#allocation2 + $0x860] sm:$0xff]
    %v356 = vld [vmem:[#allocation2 + $0x868] sm:$0xff]
    %v357 = vld [vmem:[#allocation2 + $0x870] sm:$0xff]
    %v358 = vld [vmem:[#allocation2 + $0x878] sm:$0xff]
    %v359 = vld [vmem:[#allocation2 + $0x880] sm:$0xff]
    %v360 = vld [vmem:[#allocation2 + $0x888] sm:$0xff]
    %v361 = vld [vmem:[#allocation2 + $0x890] sm:$0xff]
    %v362 = vld [vmem:[#allocation2 + $0x898] sm:$0xff]
    %v363 = vld [vmem:[#allocation2 + $0x8a0] sm:$0xff]
    %v364 = vld [vmem:[#allocation2 + $0x8a8] sm:$0xff]
    %v365 = vld [vmem:[#allocation2 + $0x8b0] sm:$0xff]
    %v366 = vld [vmem:[#allocation2 + $0x8b8] sm:$0xff]
    %v367 = vld [vmem:[#allocation2 + $0x8c0] sm:$0xff]
    %v368 = vld [vmem:[#allocation2 + $0x8c8] sm:$0xff]
    %v369 = vld [vmem:[#allocation2 + $0x8d0] sm:$0xff]
    %v370 = vld [vmem:[#allocation2 + $0x8d8] sm:$0xff]
    %v371 = vld [vmem:[#allocation2 + $0x8e0] sm:$0xff]
    %v372 = vld [vmem:[#allocation2 + $0x8e8] sm:$0xff]
    %v373 = vld [vmem:[#allocation2 + $0x8f0] sm:$0xff]
    %v374 = vld [vmem:[#allocation2 + $0x8f8] sm:$0xff]
    %v375 = vld [vmem:[#allocation2 + $0x900] sm:$0xff]
    %v376 = vld [vmem:[#allocation2 + $0x908] sm:$0xff]
    %v377 = vld [vmem:[#allocation2 + $0x910] sm:$0xff]
    %v378 = vld [vmem:[#allocation2 + $0x918] sm:$0xff]
    %v379 = vld [vmem:[#allocation2 + $0x920] sm:$0xff]
    %v380 = vld [vmem:[#allocation2 + $0x928] sm:$0xff]
    %v381 = vld [vmem:[#allocation2 + $0x930] sm:$0xff]
    %v382 = vld [vmem:[#allocation2 + $0x938] sm:$0xff]
    %v383 = vld [vmem:[#allocation2 + $0x940] sm:$0xff]
    %v384 = vld [vmem:[#allocation2 + $0x948] sm:$0xff]
    %v385 = vld [vmem:[#allocation2 + $0x950] sm:$0xff]
    %v386 = vld [vmem:[#allocation2 + $0x958] sm:$0xff]
    %v387 = vld [vmem:[#allocation2 + $0x960] sm:$0xff]
    %v388 = vld [vmem:[#allocation2 + $0x968] sm:$0xff]
    %v389 = vld [vmem:[#allocation2 + $0x970] sm:$0xff]
    %v390 = vld [vmem:[#allocation2 + $0x978] sm:$0xff]
    %v391 = vld [vmem:[#allocation2 + $0x980] sm:$0xff]
    %v392 = vld [vmem:[#allocation2 + $0x988] sm:$0xff]
    %v393 = vld [vmem:[#allocation2 + $0x990] sm:$0xff]
    %v394 = vld [vmem:[#allocation2 + $0x998] sm:$0xff]
    %v395 = vld [vmem:[#allocation2 + $0x9a0] sm:$0xff]
    %v396 = vld [vmem:[#allocation2 + $0x9a8] sm:$0xff]
    %v397 = vld [vmem:[#allocation2 + $0x9b0] sm:$0xff]
    %v398 = vld [vmem:[#allocation2 + $0x9b8] sm:$0xff]
    %v399 = vld [vmem:[#allocation2 + $0x9c0] sm:$0xff]
    %v400 = vld [vmem:[#allocation2 + $0x9c8] sm:$0xff]
    %v401 = vld [vmem:[#allocation2 + $0x9d0] sm:$0xff]
    %v402 = vld [vmem:[#allocation2 + $0x9d8] sm:$0xff]
    %v403 = vld [vmem:[#allocation2 + $0x9e0] sm:$0xff]
    %v404 = vld [vmem:[#allocation2 + $0x9e8] sm:$0xff]
    %v405 = vld [vmem:[#allocation2 + $0x9f0] sm:$0xff]
    %v406 = vld [vmem:[#allocation2 + $0x9f8] sm:$0xff]
    %v407 = vld [vmem:[#allocation2 + $0xa00] sm:$0xff]
    %v408 = vld [vmem:[#allocation2 + $0xa08] sm:$0xff]
    %v409 = vld [vmem:[#allocation2 + $0xa10] sm:$0xff]
    %v410 = vld [vmem:[#allocation2 + $0xa18] sm:$0xff]
    %v411 = vld [vmem:[#allocation2 + $0xa20] sm:$0xff]
    %v412 = vld [vmem:[#allocation2 + $0xa28] sm:$0xff]
    %v413 = vld [vmem:[#allocation2 + $0xa30] sm:$0xff]
    %v414 = vld [vmem:[#allocation2 + $0xa38] sm:$0xff]
    %v415 = vld [vmem:[#allocation2 + $0xa40] sm:$0xff]
    %v416 = vld [vmem:[#allocation2 + $0xa48] sm:$0xff]
    %v417 = vld [vmem:[#allocation2 + $0xa50] sm:$0xff]
    %v418 = vld [vmem:[#allocation2 + $0xa58] sm:$0xff]
    %v419 = vld [vmem:[#allocation2 + $0xa60] sm:$0xff]
    %v420 = vld [vmem:[#allocation2 + $0xa68] sm:$0xff]
    %v421 = vld [vmem:[#allocation2 + $0xa70] sm:$0xff]
    %v422 = vld [vmem:[#allocation2 + $0xa78] sm:$0xff]
    %v423 = vld [vmem:[#allocation2 + $0xa80] sm:$0xff]
    %v424 = vld [vmem:[#allocation2 + $0xa88] sm:$0xff]
    %v425 = vld [vmem:[#allocation2 + $0xa90] sm:$0xff]
    %v426 = vld [vmem:[#allocation2 + $0xa98] sm:$0xff]
    %v427 = vld [vmem:[#allocation2 + $0xaa0] sm:$0xff]
    %v428 = vld [vmem:[#allocation2 + $0xaa8] sm:$0xff]
    %v429 = vld [vmem:[#allocation2 + $0xab0] sm:$0xff]
    %v430 = vld [vmem:[#allocation2 + $0xab8] sm:$0xff]
    %v431 = vld [vmem:[#allocation2 + $0xac0] sm:$0xff]
    %v432 = vld [vmem:[#allocation2 + $0xac8] sm:$0xff]
    %v433 = vld [vmem:[#allocation2 + $0xad0] sm:$0xff]
    %v434 = vld [vmem:[#allocation2 + $0xad8] sm:$0xff]
    %v435 = vld [vmem:[#allocation2 + $0xae0] sm:$0xff]
    %v436 = vld [vmem:[#allocation2 + $0xae8] sm:$0xff]
    %v437 = vld [vmem:[#allocation2 + $0xaf0] sm:$0xff]
    %v438 = vld [vmem:[#allocation2 + $0xaf8] sm:$0xff]
    %v439 = vld [vmem:[#allocation2 + $0xb00] sm:$0xff]
    %v440 = vld [vmem:[#allocation2 + $0xb08] sm:$0xff]
    %v441 = vld [vmem:[#allocation2 + $0xb10] sm:$0xff]
    %v442 = vld [vmem:[#allocation2 + $0xb18] sm:$0xff]
    %v443 = vld [vmem:[#allocation2 + $0xb20] sm:$0xff]
    %v444 = vld [vmem:[#allocation2 + $0xb28] sm:$0xff]
    %v445 = vld [vmem:[#allocation2 + $0xb30] sm:$0xff]
    %v446 = vld [vmem:[#allocation2 + $0xb38] sm:$0xff]
    %v447 = vld [vmem:[#allocation2 + $0xb40] sm:$0xff]
    %v448 = vld [vmem:[#allocation2 + $0xb48] sm:$0xff]
    %v449 = vld [vmem:[#allocation2 + $0xb50] sm:$0xff]
    %v450 = vld [vmem:[#allocation2 + $0xb58] sm:$0xff]
    %v451 = vld [vmem:[#allocation2 + $0xb60] sm:$0xff]
    %v452 = vld [vmem:[#allocation2 + $0xb68] sm:$0xff]
    %v453 = vld [vmem:[#allocation2 + $0xb70] sm:$0xff]
    %v454 = vld [vmem:[#allocation2 + $0xb78] sm:$0xff]
    %v455 = vld [vmem:[#allocation2 + $0xb80] sm:$0xff]
    %v456 = vld [vmem:[#allocation2 + $0xb88] sm:$0xff]
    %v457 = vld [vmem:[#allocation2 + $0xb90] sm:$0xff]
    %v458 = vld [vmem:[#allocation2 + $0xb98] sm:$0xff]
    %v459 = vld [vmem:[#allocation2 + $0xba0] sm:$0xff]
    %v460 = vld [vmem:[#allocation2 + $0xba8] sm:$0xff]
    %v461 = vld [vmem:[#allocation2 + $0xbb0] sm:$0xff]
    %v462 = vld [vmem:[#allocation2 + $0xbb8] sm:$0xff]
    %v463 = vld [vmem:[#allocation2 + $0xbc0] sm:$0xff]
    %v464 = vld [vmem:[#allocation2 + $0xbc8] sm:$0xff]
    %v465 = vld [vmem:[#allocation2 + $0xbd0] sm:$0xff]
    %v466 = vld [vmem:[#allocation2 + $0xbd8] sm:$0xff]
    %v467 = vld [vmem:[#allocation2 + $0xbe0] sm:$0xff]
    %v468 = vld [vmem:[#allocation2 + $0xbe8] sm:$0xff]
    %v469 = vld [vmem:[#allocation2 + $0xbf0] sm:$0xff]
    %v470 = vld [vmem:[#allocation2 + $0xbf8] sm:$0xff]
    %v471 = vld [vmem:[#allocation2 + $0xc00] sm:$0xff]
    %v472 = vld [vmem:[#allocation2 + $0xc08] sm:$0xff]
    %v473 = vld [vmem:[#allocation2 + $0xc10] sm:$0xff]
    %v474 = vld [vmem:[#allocation2 + $0xc18] sm:$0xff]
    %v475 = vld [vmem:[#allocation2 + $0xc20] sm:$0xff]
    %v476 = vld [vmem:[#allocation2 + $0xc28] sm:$0xff]
    %v477 = vld [vmem:[#allocation2 + $0xc30] sm:$0xff]
    %v478 = vld [vmem:[#allocation2 + $0xc38] sm:$0xff]
    %v479 = vld [vmem:[#allocation2 + $0xc40] sm:$0xff]
    %v480 = vld [vmem:[#allocation2 + $0xc48] sm:$0xff]
    %v481 = vld [vmem:[#allocation2 + $0xc50] sm:$0xff]
    %v482 = vld [vmem:[#allocation2 + $0xc58] sm:$0xff]
    %v483 = vld [vmem:[#allocation2 + $0xc60] sm:$0xff]
    %v484 = vld [vmem:[#allocation2 + $0xc68] sm:$0xff]
    %v485 = vld [vmem:[#allocation2 + $0xc70] sm:$0xff]
    %v486 = vld [vmem:[#allocation2 + $0xc78] sm:$0xff]
    %v487 = vld [vmem:[#allocation2 + $0xc80] sm:$0xff]
    %v488 = vld [vmem:[#allocation2 + $0xc88] sm:$0xff]
    %v489 = vld [vmem:[#allocation2 + $0xc90] sm:$0xff]
    %v490 = vld [vmem:[#allocation2 + $0xc98] sm:$0xff]
    %v491 = vld [vmem:[#allocation2 + $0xca0] sm:$0xff]
    %v492 = vld [vmem:[#allocation2 + $0xca8] sm:$0xff]
    %v493 = vld [vmem:[#allocation2 + $0xcb0] sm:$0xff]
    %v494 = vld [vmem:[#allocation2 + $0xcb8] sm:$0xff]
    %v495 = vld [vmem:[#allocation2 + $0xcc0] sm:$0xff]
    %v496 = vld [vmem:[#allocation2 + $0xcc8] sm:$0xff]
    %v497 = vld [vmem:[#allocation2 + $0xcd0] sm:$0xff]
    %v498 = vld [vmem:[#allocation2 + $0xcd8] sm:$0xff]
    %v499 = vld [vmem:[#allocation2 + $0xce0] sm:$0xff]
    %v500 = vld [vmem:[#allocation2 + $0xce8] sm:$0xff]
    %v501 = vld [vmem:[#allocation2 + $0xcf0] sm:$0xff]
    %v502 = vld [vmem:[#allocation2 + $0xcf8] sm:$0xff]
    %v503 = vld [vmem:[#allocation2 + $0xd00] sm:$0xff]
    %v504 = vld [vmem:[#allocation2 + $0xd08] sm:$0xff]
    %v505 = vld [vmem:[#allocation2 + $0xd10] sm:$0xff]
    %v506 = vld [vmem:[#allocation2 + $0xd18] sm:$0xff]
    %v507 = vld [vmem:[#allocation2 + $0xd20] sm:$0xff]
    %v508 = vld [vmem:[#allocation2 + $0xd28] sm:$0xff]
    %v509 = vld [vmem:[#allocation2 + $0xd30] sm:$0xff]
    %v510 = vld [vmem:[#allocation2 + $0xd38] sm:$0xff]
    %v511 = vld [vmem:[#allocation2 + $0xd40] sm:$0xff]
    %v512 = vld [vmem:[#allocation2 + $0xd48] sm:$0xff]
    %v513 = vld [vmem:[#allocation2 + $0xd50] sm:$0xff]
    %v514 = vld [vmem:[#allocation2 + $0xd58] sm:$0xff]
    %v515 = vld [vmem:[#allocation2 + $0xd60] sm:$0xff]
    %v516 = vld [vmem:[#allocation2 + $0xd68] sm:$0xff]
    %v517 = vld [vmem:[#allocation2 + $0xd70] sm:$0xff]
    %v518 = vld [vmem:[#allocation2 + $0xd78] sm:$0xff]
    %v519 = vld [vmem:[#allocation2 + $0xd80] sm:$0xff]
    %v520 = vld [vmem:[#allocation2 + $0xd88] sm:$0xff]
    %v521 = vld [vmem:[#allocation2 + $0xd90] sm:$0xff]
    %v522 = vld [vmem:[#allocation2 + $0xd98] sm:$0xff]
    %v523 = vld [vmem:[#allocation2 + $0xda0] sm:$0xff]
    %v524 = vld [vmem:[#allocation2 + $0xda8] sm:$0xff]
    %v525 = vld [vmem:[#allocation2 + $0xdb0] sm:$0xff]
    %v526 = vld [vmem:[#allocation2 + $0xdb8] sm:$0xff]
    %v527 = vld [vmem:[#allocation2 + $0xdc0] sm:$0xff]
    %v528 = vld [vmem:[#allocation2 + $0xdc8] sm:$0xff]
    %v529 = vld [vmem:[#allocation2 + $0xdd0] sm:$0xff]
    %v530 = vld [vmem:[#allocation2 + $0xdd8] sm:$0xff]
    %v531 = vld [vmem:[#allocation2 + $0xde0] sm:$0xff]
    %v532 = vld [vmem:[#allocation2 + $0xde8] sm:$0xff]
    %v533 = vld [vmem:[#allocation2 + $0xdf0] sm:$0xff]
    %v534 = vld [vmem:[#allocation2 + $0xdf8] sm:$0xff]
    %v535 = vld [vmem:[#allocation2 + $0xe00] sm:$0xff]
    %v536 = vld [vmem:[#allocation2 + $0xe08] sm:$0xff]
    %v537 = vld [vmem:[#allocation2 + $0xe10] sm:$0xff]
    %v538 = vld [vmem:[#allocation2 + $0xe18] sm:$0xff]
    %v539 = vld [vmem:[#allocation2 + $0xe20] sm:$0xff]
    %v540 = vld [vmem:[#allocation2 + $0xe28] sm:$0xff]
    %v541 = vld [vmem:[#allocation2 + $0xe30] sm:$0xff]
    %v542 = vld [vmem:[#allocation2 + $0xe38] sm:$0xff]
    %v543 = vld [vmem:[#allocation2 + $0xe40] sm:$0xff]
    %v544 = vld [vmem:[#allocation2 + $0xe48] sm:$0xff]
    %v545 = vld [vmem:[#allocation2 + $0xe50] sm:$0xff]
    %v546 = vld [vmem:[#allocation2 + $0xe58] sm:$0xff]
    %v547 = vld [vmem:[#allocation2 + $0xe60] sm:$0xff]
    %v548 = vld [vmem:[#allocation2 + $0xe68] sm:$0xff]
    %v549 = vld [vmem:[#allocation2 + $0xe70] sm:$0xff]
    %v550 = vld [vmem:[#allocation2 + $0xe78] sm:$0xff]
    %v551 = vld [vmem:[#allocation2 + $0xe80] sm:$0xff]
    %v552 = vld [vmem:[#allocation2 + $0xe88] sm:$0xff]
    %v553 = vld [vmem:[#allocation2 + $0xe90] sm:$0xff]
    %v554 = vld [vmem:[#allocation2 + $0xe98] sm:$0xff]
    %v555 = vld [vmem:[#allocation2 + $0xea0] sm:$0xff]
    %v556 = vld [vmem:[#allocation2 + $0xea8] sm:$0xff]
    %v557 = vld [vmem:[#allocation2 + $0xeb0] sm:$0xff]
    %v558 = vld [vmem:[#allocation2 + $0xeb8] sm:$0xff]
    %v559 = vld [vmem:[#allocation2 + $0xec0] sm:$0xff]
    %v560 = vld [vmem:[#allocation2 + $0xec8] sm:$0xff]
    %v561 = vld [vmem:[#allocation2 + $0xed0] sm:$0xff]
    %v562 = vld [vmem:[#allocation2 + $0xed8] sm:$0xff]
    %v563 = vld [vmem:[#allocation2 + $0xee0] sm:$0xff]
    %v564 = vld [vmem:[#allocation2 + $0xee8] sm:$0xff]
    %v565 = vld [vmem:[#allocation2 + $0xef0] sm:$0xff]
    %v566 = vld [vmem:[#allocation2 + $0xef8] sm:$0xff]
    %v567 = vld [vmem:[#allocation2 + $0xf00] sm:$0xff]
    %v568 = vld [vmem:[#allocation2 + $0xf08] sm:$0xff]
    %v569 = vld [vmem:[#allocation2 + $0xf10] sm:$0xff]
    %v570 = vld [vmem:[#allocation2 + $0xf18] sm:$0xff]
    %v571 = vld [vmem:[#allocation2 + $0xf20] sm:$0xff]
    %v572 = vld [vmem:[#allocation2 + $0xf28] sm:$0xff]
    %v573 = vld [vmem:[#allocation2 + $0xf30] sm:$0xff]
    %v574 = vld [vmem:[#allocation2 + $0xf38] sm:$0xff]
    %v575 = vld [vmem:[#allocation2 + $0xf40] sm:$0xff]
    %v576 = vld [vmem:[#allocation2 + $0xf48] sm:$0xff]
    %v577 = vld [vmem:[#allocation2 + $0xf50] sm:$0xff]
    %v578 = vld [vmem:[#allocation2 + $0xf58] sm:$0xff]
    %v579 = vld [vmem:[#allocation2 + $0xf60] sm:$0xff]
    %v580 = vld [vmem:[#allocation2 + $0xf68] sm:$0xff]
    %v581 = vld [vmem:[#allocation2 + $0xf70] sm:$0xff]
    %v582 = vld [vmem:[#allocation2 + $0xf78] sm:$0xff]
    %v583 = vld [vmem:[#allocation2 + $0xf80] sm:$0xff]
    %v584 = vld [vmem:[#allocation2 + $0xf88] sm:$0xff]
    %v585 = vld [vmem:[#allocation2 + $0xf90] sm:$0xff]
    %v586 = vld [vmem:[#allocation2 + $0xf98] sm:$0xff]
    %v587 = vld [vmem:[#allocation2 + $0xfa0] sm:$0xff]
    %v588 = vld [vmem:[#allocation2 + $0xfa8] sm:$0xff]
    %v589 = vld [vmem:[#allocation2 + $0xfb0] sm:$0xff]
    %v590 = vld [vmem:[#allocation2 + $0xfb8] sm:$0xff]
    %v591 = vld [vmem:[#allocation2 + $0xfc0] sm:$0xff]
    %v592 = vld [vmem:[#allocation2 + $0xfc8] sm:$0xff]
    %v593 = vld [vmem:[#allocation2 + $0xfd0] sm:$0xff]
    %v594 = vld [vmem:[#allocation2 + $0xfd8] sm:$0xff]
    %v595 = vld [vmem:[#allocation2 + $0xfe0] sm:$0xff]
    %v596 = vld [vmem:[#allocation2 + $0xfe8] sm:$0xff]
    %v597 = vld [vmem:[#allocation2 + $0xff0] sm:$0xff]
    %v598 = vld [vmem:[#allocation2 + $0xff8] sm:$0xff]
    %v599 = vld [vmem:[#allocation4] sm:$0xf]
    %v601 = vlaneseq
    %v602 = vshrl.u32 %v601, 7
    %v603 = vsub.s32 0, %v602
    %v604 = vrot.slane %v599, %v603
    %v605 = vlaneseq
    %v606 = vshrl.u32 %v605, 7
    %v607 = vsub.s32 1, %v606
    %v608 = vrot.slane %v599, %v607
    %v609 = vlaneseq
    %v610 = vshrl.u32 %v609, 7
    %v611 = vsub.s32 2, %v610
    %v612 = vrot.slane %v599, %v611
    %v613 = vlaneseq
    %v614 = vshrl.u32 %v613, 7
    %v615 = vsub.s32 3, %v614
    %v616 = vrot.slane %v599, %v615
    %621 = vmatprep.subr.mxu0 %v88
    %622 = vmatpush1.msra.mxu0 %v87
    %623 = vmatprep.subr.mxu0 %v92
    %624 = vmatpush1.msra.mxu0 %v91
    %625 = vmatprep.subr.mxu0 %v96
    %626 = vmatpush1.msra.mxu0 %v95
    %627 = vmatprep.subr.mxu0 %v100
    %628 = vmatpush1.msra.mxu0 %v99
    %629 = vmatprep.subr.mxu0 %v104
    %630 = vmatpush1.msra.mxu0 %v103
    %631 = vmatprep.subr.mxu0 %v108
    %632 = vmatpush1.msra.mxu0 %v107
    %633 = vmatprep.subr.mxu0 %v112
    %634 = vmatpush1.msra.mxu0 %v111
    %635 = vmatprep.subr.mxu0 %v116
    %636 = vmatpush1.msra.mxu0 %v115
    %637 = vmatprep.subr.mxu0 %v120
    %638 = vmatpush1.msra.mxu0 %v119
    %639 = vmatprep.subr.mxu0 %v124
    %640 = vmatpush1.msra.mxu0 %v123
    %641 = vmatprep.subr.mxu0 %v128
    %642 = vmatpush1.msra.mxu0 %v127
    %643 = vmatprep.subr.mxu0 %v132
    %644 = vmatpush1.msra.mxu0 %v131
    %645 = vmatprep.subr.mxu0 %v136
    %646 = vmatpush1.msra.mxu0 %v135
    %647 = vmatprep.subr.mxu0 %v140
    %648 = vmatpush1.msra.mxu0 %v139
    %649 = vmatprep.subr.mxu0 %v144
    %650 = vmatpush1.msra.mxu0 %v143
    %651 = vmatprep.subr.mxu0 %v148
    %652 = vmatpush1.msra.mxu0 %v147
    %653 = vmatprep.subr.mxu0 %v152
    %654 = vmatpush1.msra.mxu0 %v151
    %655 = vmatprep.subr.mxu0 %v156
    %656 = vmatpush1.msra.mxu0 %v155
    %657 = vmatprep.subr.mxu0 %v160
    %658 = vmatpush1.msra.mxu0 %v159
    %659 = vmatprep.subr.mxu0 %v164
    %660 = vmatpush1.msra.mxu0 %v163
    %661 = vmatprep.subr.mxu0 %v168
    %662 = vmatpush1.msra.mxu0 %v167
    %663 = vmatprep.subr.mxu0 %v172
    %664 = vmatpush1.msra.mxu0 %v171
    %665 = vmatprep.subr.mxu0 %v176
    %666 = vmatpush1.msra.mxu0 %v175
    %667 = vmatprep.subr.mxu0 %v180
    %668 = vmatpush1.msra.mxu0 %v179
    %669 = vmatprep.subr.mxu0 %v184
    %670 = vmatpush1.msra.mxu0 %v183
    %671 = vmatprep.subr.mxu0 %v188
    %672 = vmatpush1.msra.mxu0 %v187
    %673 = vmatprep.subr.mxu0 %v192
    %674 = vmatpush1.msra.mxu0 %v191
    %675 = vmatprep.subr.mxu0 %v196
    %676 = vmatpush1.msra.mxu0 %v195
    %677 = vmatprep.subr.mxu0 %v200
    %678 = vmatpush1.msra.mxu0 %v199
    %679 = vmatprep.subr.mxu0 %v204
    %680 = vmatpush1.msra.mxu0 %v203
    %681 = vmatprep.subr.mxu0 %v208
    %682 = vmatpush1.msra.mxu0 %v207
    %683 = vmatprep.subr.mxu0 %v212
    %684 = vmatpush1.msra.mxu0 %v211
    %685 = vmatprep.mubr.f32.mxu0 %v72
    %686 = vmatmul.mubr.f32.gmra.mrb[0].mxu0 %v71
    %v687 = vpop.f32.mrb[0].mxu0
    %v688 = vadd.f32 %v604, %v687
    %v689 = vpop.f32.mrb[0].mxu0
    %v690 = vadd.f32 %v608, %v689
    %691 = vmatprep.mubr.f32.mxu0 %v80
    %692 = vmatmul.mubr.f32.gmra.mrb[0].mxu0 %v79
    %v693 = vpop.f32.mrb[0].mxu0
    %v694 = vadd.f32 %v604, %v693
    %v695 = vpop.f32.mrb[0].mxu0
    %v696 = vadd.f32 %v608, %v695
    %697 = vdwg.mxu0
    %698 = vmatprep.subr.mxu0 %v216
    %699 = vmatpush1.msra.mxu0 %v215
    %700 = vmatprep.subr.mxu0 %v220
    %701 = vmatpush1.msra.mxu0 %v219
    %702 = vmatprep.subr.mxu0 %v224
    %703 = vmatpush1.msra.mxu0 %v223
    %704 = vmatprep.subr.mxu0 %v228
    %705 = vmatpush1.msra.mxu0 %v227
    %706 = vmatprep.subr.mxu0 %v232
    %707 = vmatpush1.msra.mxu0 %v231
    %708 = vmatprep.subr.mxu0 %v236
    %709 = vmatpush1.msra.mxu0 %v235
    %710 = vmatprep.subr.mxu0 %v240
    %711 = vmatpush1.msra.mxu0 %v239
    %712 = vmatprep.subr.mxu0 %v244
    %713 = vmatpush1.msra.mxu0 %v243
    %714 = vmatprep.subr.mxu0 %v248
    %715 = vmatpush1.msra.mxu0 %v247
    %716 = vmatprep.subr.mxu0 %v252
    %717 = vmatpush1.msra.mxu0 %v251
    %718 = vmatprep.subr.mxu0 %v256
    %719 = vmatpush1.msra.mxu0 %v255
    %720 = vmatprep.subr.mxu0 %v260
    %721 = vmatpush1.msra.mxu0 %v259
    %722 = vmatprep.subr.mxu0 %v264
    %723 = vmatpush1.msra.mxu0 %v263
    %724 = vmatprep.subr.mxu0 %v268
    %725 = vmatpush1.msra.mxu0 %v267
    %726 = vmatprep.subr.mxu0 %v272
    %727 = vmatpush1.msra.mxu0 %v271
    %728 = vmatprep.subr.mxu0 %v276
    %729 = vmatpush1.msra.mxu0 %v275
    %730 = vmatprep.subr.mxu0 %v280
    %731 = vmatpush1.msra.mxu0 %v279
    %732 = vmatprep.subr.mxu0 %v284
    %733 = vmatpush1.msra.mxu0 %v283
    %734 = vmatprep.subr.mxu0 %v288
    %735 = vmatpush1.msra.mxu0 %v287
    %736 = vmatprep.subr.mxu0 %v292
    %737 = vmatpush1.msra.mxu0 %v291
    %738 = vmatprep.subr.mxu0 %v296
    %739 = vmatpush1.msra.mxu0 %v295
    %740 = vmatprep.subr.mxu0 %v300
    %741 = vmatpush1.msra.mxu0 %v299
    %742 = vmatprep.subr.mxu0 %v304
    %743 = vmatpush1.msra.mxu0 %v303
    %744 = vmatprep.subr.mxu0 %v308
    %745 = vmatpush1.msra.mxu0 %v307
    %746 = vmatprep.subr.mxu0 %v312
    %747 = vmatpush1.msra.mxu0 %v311
    %748 = vmatprep.subr.mxu0 %v316
    %749 = vmatpush1.msra.mxu0 %v315
    %750 = vmatprep.subr.mxu0 %v320
    %751 = vmatpush1.msra.mxu0 %v319
    %752 = vmatprep.subr.mxu0 %v324
    %753 = vmatpush1.msra.mxu0 %v323
    %754 = vmatprep.subr.mxu0 %v328
    %755 = vmatpush1.msra.mxu0 %v327
    %756 = vmatprep.subr.mxu0 %v332
    %757 = vmatpush1.msra.mxu0 %v331
    %758 = vmatprep.subr.mxu0 %v336
    %759 = vmatpush1.msra.mxu0 %v335
    %760 = vmatprep.subr.mxu0 %v340
    %761 = vmatpush1.msra.mxu0 %v339
    %762 = vmatprep.mubr.f32.mxu0 %v74
    %763 = vmatmul.mubr.f32.gmra.mrb[0].mxu0 %v73
    %v764 = vpop.f32.mrb[0].mxu0
    %v765 = vadd.f32 %v688, %v764
    %v766 = vpop.f32.mrb[0].mxu0
    %v767 = vadd.f32 %v690, %v766
    %768 = vmatprep.mubr.f32.mxu0 %v82
    %769 = vmatmul.mubr.f32.gmra.mrb[0].mxu0 %v81
    %v770 = vpop.f32.mrb[0].mxu0
    %v771 = vadd.f32 %v694, %v770
    %v772 = vpop.f32.mrb[0].mxu0
    %v773 = vadd.f32 %v696, %v772
    %774 = vdwg.mxu0
    %775 = vmatprep.subr.mxu0 %v344
    %776 = vmatpush1.msra.mxu0 %v343
    %777 = vmatprep.subr.mxu0 %v348
    %778 = vmatpush1.msra.mxu0 %v347
    %779 = vmatprep.subr.mxu0 %v352
    %780 = vmatpush1.msra.mxu0 %v351
    %781 = vmatprep.subr.mxu0 %v356
    %782 = vmatpush1.msra.mxu0 %v355
    %783 = vmatprep.subr.mxu0 %v360
    %784 = vmatpush1.msra.mxu0 %v359
    %785 = vmatprep.subr.mxu0 %v364
    %786 = vmatpush1.msra.mxu0 %v363
    %787 = vmatprep.subr.mxu0 %v368
    %788 = vmatpush1.msra.mxu0 %v367
    %789 = vmatprep.subr.mxu0 %v372
    %790 = vmatpush1.msra.mxu0 %v371
    %791 = vmatprep.subr.mxu0 %v376
    %792 = vmatpush1.msra.mxu0 %v375
    %793 = vmatprep.subr.mxu0 %v380
    %794 = vmatpush1.msra.mxu0 %v379
    %795 = vmatprep.subr.mxu0 %v384
    %796 = vmatpush1.msra.mxu0 %v383
    %797 = vmatprep.subr.mxu0 %v388
    %798 = vmatpush1.msra.mxu0 %v387
    %799 = vmatprep.subr.mxu0 %v392
    %800 = vmatpush1.msra.mxu0 %v391
    %801 = vmatprep.subr.mxu0 %v396
    %802 = vmatpush1.msra.mxu0 %v395
    %803 = vmatprep.subr.mxu0 %v400
    %804 = vmatpush1.msra.mxu0 %v399
    %805 = vmatprep.subr.mxu0 %v404
    %806 = vmatpush1.msra.mxu0 %v403
    %807 = vmatprep.subr.mxu0 %v408
    %808 = vmatpush1.msra.mxu0 %v407
    %809 = vmatprep.subr.mxu0 %v412
    %810 = vmatpush1.msra.mxu0 %v411
    %811 = vmatprep.subr.mxu0 %v416
    %812 = vmatpush1.msra.mxu0 %v415
    %813 = vmatprep.subr.mxu0 %v420
    %814 = vmatpush1.msra.mxu0 %v419
    %815 = vmatprep.subr.mxu0 %v424
    %816 = vmatpush1.msra.mxu0 %v423
    %817 = vmatprep.subr.mxu0 %v428
    %818 = vmatpush1.msra.mxu0 %v427
    %819 = vmatprep.subr.mxu0 %v432
    %820 = vmatpush1.msra.mxu0 %v431
    %821 = vmatprep.subr.mxu0 %v436
    %822 = vmatpush1.msra.mxu0 %v435
    %823 = vmatprep.subr.mxu0 %v440
    %824 = vmatpush1.msra.mxu0 %v439
    %825 = vmatprep.subr.mxu0 %v444
    %826 = vmatpush1.msra.mxu0 %v443
    %827 = vmatprep.subr.mxu0 %v448
    %828 = vmatpush1.msra.mxu0 %v447
    %829 = vmatprep.subr.mxu0 %v452
    %830 = vmatpush1.msra.mxu0 %v451
    %831 = vmatprep.subr.mxu0 %v456
    %832 = vmatpush1.msra.mxu0 %v455
    %833 = vmatprep.subr.mxu0 %v460
    %834 = vmatpush1.msra.mxu0 %v459
    %835 = vmatprep.subr.mxu0 %v464
    %836 = vmatpush1.msra.mxu0 %v463
    %837 = vmatprep.subr.mxu0 %v468
    %838 = vmatpush1.msra.mxu0 %v467
    %839 = vmatprep.mubr.f32.mxu0 %v76
    %840 = vmatmul.mubr.f32.gmra.mrb[0].mxu0 %v75
    %v841 = vpop.f32.mrb[0].mxu0
    %v842 = vadd.f32 %v765, %v841
    %v843 = vpop.f32.mrb[0].mxu0
    %v844 = vadd.f32 %v767, %v843
    %845 = vmatprep.mubr.f32.mxu0 %v84
    %846 = vmatmul.mubr.f32.gmra.mrb[0].mxu0 %v83
    %v847 = vpop.f32.mrb[0].mxu0
    %v848 = vadd.f32 %v771, %v847
    %v849 = vpop.f32.mrb[0].mxu0
    %v850 = vadd.f32 %v773, %v849
    %851 = vdwg.mxu0
    %852 = vmatprep.subr.mxu0 %v472
    %853 = vmatpush1.msra.mxu0 %v471
    %854 = vmatprep.subr.mxu0 %v476
    %855 = vmatpush1.msra.mxu0 %v475
    %856 = vmatprep.subr.mxu0 %v480
    %857 = vmatpush1.msra.mxu0 %v479
    %858 = vmatprep.subr.mxu0 %v484
    %859 = vmatpush1.msra.mxu0 %v483
    %860 = vmatprep.subr.mxu0 %v488
    %861 = vmatpush1.msra.mxu0 %v487
    %862 = vmatprep.subr.mxu0 %v492
    %863 = vmatpush1.msra.mxu0 %v491
    %864 = vmatprep.subr.mxu0 %v496
    %865 = vmatpush1.msra.mxu0 %v495
    %866 = vmatprep.subr.mxu0 %v500
    %867 = vmatpush1.msra.mxu0 %v499
    %868 = vmatprep.subr.mxu0 %v504
    %869 = vmatpush1.msra.mxu0 %v503
    %870 = vmatprep.subr.mxu0 %v508
    %871 = vmatpush1.msra.mxu0 %v507
    %872 = vmatprep.subr.mxu0 %v512
    %873 = vmatpush1.msra.mxu0 %v511
    %874 = vmatprep.subr.mxu0 %v516
    %875 = vmatpush1.msra.mxu0 %v515
    %876 = vmatprep.subr.mxu0 %v520
    %877 = vmatpush1.msra.mxu0 %v519
    %878 = vmatprep.subr.mxu0 %v524
    %879 = vmatpush1.msra.mxu0 %v523
    %880 = vmatprep.subr.mxu0 %v528
    %881 = vmatpush1.msra.mxu0 %v527
    %882 = vmatprep.subr.mxu0 %v532
    %883 = vmatpush1.msra.mxu0 %v531
    %884 = vmatprep.subr.mxu0 %v536
    %885 = vmatpush1.msra.mxu0 %v535
    %886 = vmatprep.subr.mxu0 %v540
    %887 = vmatpush1.msra.mxu0 %v539
    %888 = vmatprep.subr.mxu0 %v544
    %889 = vmatpush1.msra.mxu0 %v543
    %890 = vmatprep.subr.mxu0 %v548
    %891 = vmatpush1.msra.mxu0 %v547
    %892 = vmatprep.subr.mxu0 %v552
    %893 = vmatpush1.msra.mxu0 %v551
    %894 = vmatprep.subr.mxu0 %v556
    %895 = vmatpush1.msra.mxu0 %v555
    %896 = vmatprep.subr.mxu0 %v560
    %897 = vmatpush1.msra.mxu0 %v559
    %898 = vmatprep.subr.mxu0 %v564
    %899 = vmatpush1.msra.mxu0 %v563
    %900 = vmatprep.subr.mxu0 %v568
    %901 = vmatpush1.msra.mxu0 %v567
    %902 = vmatprep.subr.mxu0 %v572
    %903 = vmatpush1.msra.mxu0 %v571
    %904 = vmatprep.subr.mxu0 %v576
    %905 = vmatpush1.msra.mxu0 %v575
    %906 = vmatprep.subr.mxu0 %v580
    %907 = vmatpush1.msra.mxu0 %v579
    %908 = vmatprep.subr.mxu0 %v584
    %909 = vmatpush1.msra.mxu0 %v583
    %910 = vmatprep.subr.mxu0 %v588
    %911 = vmatpush1.msra.mxu0 %v587
    %912 = vmatprep.subr.mxu0 %v592
    %913 = vmatpush1.msra.mxu0 %v591
    %914 = vmatprep.subr.mxu0 %v596
    %915 = vmatpush1.msra.mxu0 %v595
    %916 = vmatprep.mubr.f32.mxu0 %v78
    %917 = vmatmul.mubr.f32.gmra.mrb[0].mxu0 %v77
    %v918 = vpop.f32.mrb[0].mxu0
    %v919 = vadd.f32 %v842, %v918
    %v920 = vpop.f32.mrb[0].mxu0
    %v921 = vadd.f32 %v844, %v920
    %922 = vmatprep.mubr.f32.mxu0 %v86
    %923 = vmatmul.mubr.f32.gmra.mrb[0].mxu0 %v85
    %v924 = vpop.f32.mrb[0].mxu0
    %v925 = vadd.f32 %v848, %v924
    %v926 = vpop.f32.mrb[0].mxu0
    %v927 = vadd.f32 %v850, %v926
    %928 = vdwg.mxu0
    %929 = vmatprep.subr.mxu0 %v90
    %930 = vmatpush1.msra.mxu0 %v89
    %931 = vmatprep.subr.mxu0 %v94
    %932 = vmatpush1.msra.mxu0 %v93
    %933 = vmatprep.subr.mxu0 %v98
    %934 = vmatpush1.msra.mxu0 %v97
    %935 = vmatprep.subr.mxu0 %v102
    %936 = vmatpush1.msra.mxu0 %v101
    %937 = vmatprep.subr.mxu0 %v106
    %938 = vmatpush1.msra.mxu0 %v105
    %939 = vmatprep.subr.mxu0 %v110
    %940 = vmatpush1.msra.mxu0 %v109
    %941 = vmatprep.subr.mxu0 %v114
    %942 = vmatpush1.msra.mxu0 %v113
    %943 = vmatprep.subr.mxu0 %v118
    %944 = vmatpush1.msra.mxu0 %v117
    %945 = vmatprep.subr.mxu0 %v122
    %946 = vmatpush1.msra.mxu0 %v121
    %947 = vmatprep.subr.mxu0 %v126
    %948 = vmatpush1.msra.mxu0 %v125
    %949 = vmatprep.subr.mxu0 %v130
    %950 = vmatpush1.msra.mxu0 %v129
    %951 = vmatprep.subr.mxu0 %v134
    %952 = vmatpush1.msra.mxu0 %v133
    %953 = vmatprep.subr.mxu0 %v138
    %954 = vmatpush1.msra.mxu0 %v137
    %955 = vmatprep.subr.mxu0 %v142
    %956 = vmatpush1.msra.mxu0 %v141
    %957 = vmatprep.subr.mxu0 %v146
    %958 = vmatpush1.msra.mxu0 %v145
    %959 = vmatprep.subr.mxu0 %v150
    %960 = vmatpush1.msra.mxu0 %v149
    %961 = vmatprep.subr.mxu0 %v154
    %962 = vmatpush1.msra.mxu0 %v153
    %963 = vmatprep.subr.mxu0 %v158
    %964 = vmatpush1.msra.mxu0 %v157
    %965 = vmatprep.subr.mxu0 %v162
    %966 = vmatpush1.msra.mxu0 %v161
    %967 = vmatprep.subr.mxu0 %v166
    %968 = vmatpush1.msra.mxu0 %v165
    %969 = vmatprep.subr.mxu0 %v170
    %970 = vmatpush1.msra.mxu0 %v169
    %971 = vmatprep.subr.mxu0 %v174
    %972 = vmatpush1.msra.mxu0 %v173
    %973 = vmatprep.subr.mxu0 %v178
    %974 = vmatpush1.msra.mxu0 %v177
    %975 = vmatprep.subr.mxu0 %v182
    %976 = vmatpush1.msra.mxu0 %v181
    %977 = vmatprep.subr.mxu0 %v186
    %978 = vmatpush1.msra.mxu0 %v185
    %979 = vmatprep.subr.mxu0 %v190
    %980 = vmatpush1.msra.mxu0 %v189
    %981 = vmatprep.subr.mxu0 %v194
    %982 = vmatpush1.msra.mxu0 %v193
    %983 = vmatprep.subr.mxu0 %v198
    %984 = vmatpush1.msra.mxu0 %v197
    %985 = vmatprep.subr.mxu0 %v202
    %986 = vmatpush1.msra.mxu0 %v201
    %987 = vmatprep.subr.mxu0 %v206
    %988 = vmatpush1.msra.mxu0 %v205
    %989 = vmatprep.subr.mxu0 %v210
    %990 = vmatpush1.msra.mxu0 %v209
    %991 = vmatprep.subr.mxu0 %v214
    %992 = vmatpush1.msra.mxu0 %v213
    %993 = vmatprep.mubr.f32.mxu0 %v72
    %994 = vmatmul.mubr.f32.gmra.mrb[0].mxu0 %v71
    %v995 = vpop.f32.mrb[0].mxu0
    %v996 = vadd.f32 %v612, %v995
    %v997 = vpop.f32.mrb[0].mxu0
    %v998 = vadd.f32 %v616, %v997
    %999 = vmatprep.mubr.f32.mxu0 %v80
    %1000 = vmatmul.mubr.f32.gmra.mrb[0].mxu0 %v79
    %v1001 = vpop.f32.mrb[0].mxu0
    %v1002 = vadd.f32 %v612, %v1001
    %v1003 = vpop.f32.mrb[0].mxu0
    %v1004 = vadd.f32 %v616, %v1003
    %1005 = vdwg.mxu0
    %1006 = vmatprep.subr.mxu0 %v218
    %1007 = vmatpush1.msra.mxu0 %v217
    %1008 = vmatprep.subr.mxu0 %v222
    %1009 = vmatpush1.msra.mxu0 %v221
    %1010 = vmatprep.subr.mxu0 %v226
    %1011 = vmatpush1.msra.mxu0 %v225
    %1012 = vmatprep.subr.mxu0 %v230
    %1013 = vmatpush1.msra.mxu0 %v229
    %1014 = vmatprep.subr.mxu0 %v234
    %1015 = vmatpush1.msra.mxu0 %v233
    %1016 = vmatprep.subr.mxu0 %v238
    %1017 = vmatpush1.msra.mxu0 %v237
    %1018 = vmatprep.subr.mxu0 %v242
    %1019 = vmatpush1.msra.mxu0 %v241
    %1020 = vmatprep.subr.mxu0 %v246
    %1021 = vmatpush1.msra.mxu0 %v245
    %1022 = vmatprep.subr.mxu0 %v250
    %1023 = vmatpush1.msra.mxu0 %v249
    %1024 = vmatprep.subr.mxu0 %v254
    %1025 = vmatpush1.msra.mxu0 %v253
    %1026 = vmatprep.subr.mxu0 %v258
    %1027 = vmatpush1.msra.mxu0 %v257
    %1028 = vmatprep.subr.mxu0 %v262
    %1029 = vmatpush1.msra.mxu0 %v261
    %1030 = vmatprep.subr.mxu0 %v266
    %1031 = vmatpush1.msra.mxu0 %v265
    %1032 = vmatprep.subr.mxu0 %v270
    %1033 = vmatpush1.msra.mxu0 %v269
    %1034 = vmatprep.subr.mxu0 %v274
    %1035 = vmatpush1.msra.mxu0 %v273
    %1036 = vmatprep.subr.mxu0 %v278
    %1037 = vmatpush1.msra.mxu0 %v277
    %1038 = vmatprep.subr.mxu0 %v282
    %1039 = vmatpush1.msra.mxu0 %v281
    %1040 = vmatprep.subr.mxu0 %v286
    %1041 = vmatpush1.msra.mxu0 %v285
    %1042 = vmatprep.subr.mxu0 %v290
    %1043 = vmatpush1.msra.mxu0 %v289
    %1044 = vmatprep.subr.mxu0 %v294
    %1045 = vmatpush1.msra.mxu0 %v293
    %1046 = vmatprep.subr.mxu0 %v298
    %1047 = vmatpush1.msra.mxu0 %v297
    %1048 = vmatprep.subr.mxu0 %v302
    %1049 = vmatpush1.msra.mxu0 %v301
    %1050 = vmatprep.subr.mxu0 %v306
    %1051 = vmatpush1.msra.mxu0 %v305
    %1052 = vmatprep.subr.mxu0 %v310
    %1053 = vmatpush1.msra.mxu0 %v309
    %1054 = vmatprep.subr.mxu0 %v314
    %1055 = vmatpush1.msra.mxu0 %v313
    %1056 = vmatprep.subr.mxu0 %v318
    %1057 = vmatpush1.msra.mxu0 %v317
    %1058 = vmatprep.subr.mxu0 %v322
    %1059 = vmatpush1.msra.mxu0 %v321
    %1060 = vmatprep.subr.mxu0 %v326
    %1061 = vmatpush1.msra.mxu0 %v325
    %1062 = vmatprep.subr.mxu0 %v330
    %1063 = vmatpush1.msra.mxu0 %v329
    %1064 = vmatprep.subr.mxu0 %v334
    %1065 = vmatpush1.msra.mxu0 %v333
    %1066 = vmatprep.subr.mxu0 %v338
    %1067 = vmatpush1.msra.mxu0 %v337
    %1068 = vmatprep.subr.mxu0 %v342
    %1069 = vmatpush1.msra.mxu0 %v341
    %1070 = vmatprep.mubr.f32.mxu0 %v74
    %1071 = vmatmul.mubr.f32.gmra.mrb[0].mxu0 %v73
    %v1072 = vpop.f32.mrb[0].mxu0
    %v1073 = vadd.f32 %v996, %v1072
    %v1074 = vpop.f32.mrb[0].mxu0
    %v1075 = vadd.f32 %v998, %v1074
    %1076 = vmatprep.mubr.f32.mxu0 %v82
    %1077 = vmatmul.mubr.f32.gmra.mrb[0].mxu0 %v81
    %v1078 = vpop.f32.mrb[0].mxu0
    %v1079 = vadd.f32 %v1002, %v1078
    %v1080 = vpop.f32.mrb[0].mxu0
    %v1081 = vadd.f32 %v1004, %v1080
    %1082 = vdwg.mxu0
    %1083 = vmatprep.subr.mxu0 %v346
    %1084 = vmatpush1.msra.mxu0 %v345
    %1085 = vmatprep.subr.mxu0 %v350
    %1086 = vmatpush1.msra.mxu0 %v349
    %1087 = vmatprep.subr.mxu0 %v354
    %1088 = vmatpush1.msra.mxu0 %v353
    %1089 = vmatprep.subr.mxu0 %v358
    %1090 = vmatpush1.msra.mxu0 %v357
    %1091 = vmatprep.subr.mxu0 %v362
    %1092 = vmatpush1.msra.mxu0 %v361
    %1093 = vmatprep.subr.mxu0 %v366
    %1094 = vmatpush1.msra.mxu0 %v365
    %1095 = vmatprep.subr.mxu0 %v370
    %1096 = vmatpush1.msra.mxu0 %v369
    %1097 = vmatprep.subr.mxu0 %v374
    %1098 = vmatpush1.msra.mxu0 %v373
    %1099 = vmatprep.subr.mxu0 %v378
    %1100 = vmatpush1.msra.mxu0 %v377
    %1101 = vmatprep.subr.mxu0 %v382
    %1102 = vmatpush1.msra.mxu0 %v381
    %1103 = vmatprep.subr.mxu0 %v386
    %1104 = vmatpush1.msra.mxu0 %v385
    %1105 = vmatprep.subr.mxu0 %v390
    %1106 = vmatpush1.msra.mxu0 %v389
    %1107 = vmatprep.subr.mxu0 %v394
    %1108 = vmatpush1.msra.mxu0 %v393
    %1109 = vmatprep.subr.mxu0 %v398
    %1110 = vmatpush1.msra.mxu0 %v397
    %1111 = vmatprep.subr.mxu0 %v402
    %1112 = vmatpush1.msra.mxu0 %v401
    %1113 = vmatprep.subr.mxu0 %v406
    %1114 = vmatpush1.msra.mxu0 %v405
    %1115 = vmatprep.subr.mxu0 %v410
    %1116 = vmatpush1.msra.mxu0 %v409
    %1117 = vmatprep.subr.mxu0 %v414
    %1118 = vmatpush1.msra.mxu0 %v413
    %1119 = vmatprep.subr.mxu0 %v418
    %1120 = vmatpush1.msra.mxu0 %v417
    %1121 = vmatprep.subr.mxu0 %v422
    %1122 = vmatpush1.msra.mxu0 %v421
    %1123 = vmatprep.subr.mxu0 %v426
    %1124 = vmatpush1.msra.mxu0 %v425
    %1125 = vmatprep.subr.mxu0 %v430
    %1126 = vmatpush1.msra.mxu0 %v429
    %1127 = vmatprep.subr.mxu0 %v434
    %1128 = vmatpush1.msra.mxu0 %v433
    %1129 = vmatprep.subr.mxu0 %v438
    %1130 = vmatpush1.msra.mxu0 %v437
    %1131 = vmatprep.subr.mxu0 %v442
    %1132 = vmatpush1.msra.mxu0 %v441
    %1133 = vmatprep.subr.mxu0 %v446
    %1134 = vmatpush1.msra.mxu0 %v445
    %1135 = vmatprep.subr.mxu0 %v450
    %1136 = vmatpush1.msra.mxu0 %v449
    %1137 = vmatprep.subr.mxu0 %v454
    %1138 = vmatpush1.msra.mxu0 %v453
    %1139 = vmatprep.subr.mxu0 %v458
    %1140 = vmatpush1.msra.mxu0 %v457
    %1141 = vmatprep.subr.mxu0 %v462
    %1142 = vmatpush1.msra.mxu0 %v461
    %1143 = vmatprep.subr.mxu0 %v466
    %1144 = vmatpush1.msra.mxu0 %v465
    %1145 = vmatprep.subr.mxu0 %v470
    %1146 = vmatpush1.msra.mxu0 %v469
    %1147 = vmatprep.mubr.f32.mxu0 %v76
    %1148 = vmatmul.mubr.f32.gmra.mrb[0].mxu0 %v75
    %v1149 = vpop.f32.mrb[0].mxu0
    %v1150 = vadd.f32 %v1073, %v1149
    %v1151 = vpop.f32.mrb[0].mxu0
    %v1152 = vadd.f32 %v1075, %v1151
    %1153 = vmatprep.mubr.f32.mxu0 %v84
    %1154 = vmatmul.mubr.f32.gmra.mrb[0].mxu0 %v83
    %v1155 = vpop.f32.mrb[0].mxu0
    %v1156 = vadd.f32 %v1079, %v1155
    %v1157 = vpop.f32.mrb[0].mxu0
    %v1158 = vadd.f32 %v1081, %v1157
    %1159 = vdwg.mxu0
    %1160 = vmatprep.subr.mxu0 %v474
    %1161 = vmatpush1.msra.mxu0 %v473
    %1162 = vmatprep.subr.mxu0 %v478
    %1163 = vmatpush1.msra.mxu0 %v477
    %1164 = vmatprep.subr.mxu0 %v482
    %1165 = vmatpush1.msra.mxu0 %v481
    %1166 = vmatprep.subr.mxu0 %v486
    %1167 = vmatpush1.msra.mxu0 %v485
    %1168 = vmatprep.subr.mxu0 %v490
    %1169 = vmatpush1.msra.mxu0 %v489
    %1170 = vmatprep.subr.mxu0 %v494
    %1171 = vmatpush1.msra.mxu0 %v493
    %1172 = vmatprep.subr.mxu0 %v498
    %1173 = vmatpush1.msra.mxu0 %v497
    %1174 = vmatprep.subr.mxu0 %v502
    %1175 = vmatpush1.msra.mxu0 %v501
    %1176 = vmatprep.subr.mxu0 %v506
    %1177 = vmatpush1.msra.mxu0 %v505
    %1178 = vmatprep.subr.mxu0 %v510
    %1179 = vmatpush1.msra.mxu0 %v509
    %1180 = vmatprep.subr.mxu0 %v514
    %1181 = vmatpush1.msra.mxu0 %v513
    %1182 = vmatprep.subr.mxu0 %v518
    %1183 = vmatpush1.msra.mxu0 %v517
    %1184 = vmatprep.subr.mxu0 %v522
    %1185 = vmatpush1.msra.mxu0 %v521
    %1186 = vmatprep.subr.mxu0 %v526
    %1187 = vmatpush1.msra.mxu0 %v525
    %1188 = vmatprep.subr.mxu0 %v530
    %1189 = vmatpush1.msra.mxu0 %v529
    %1190 = vmatprep.subr.mxu0 %v534
    %1191 = vmatpush1.msra.mxu0 %v533
    %1192 = vmatprep.subr.mxu0 %v538
    %1193 = vmatpush1.msra.mxu0 %v537
    %1194 = vmatprep.subr.mxu0 %v542
    %1195 = vmatpush1.msra.mxu0 %v541
    %1196 = vmatprep.subr.mxu0 %v546
    %1197 = vmatpush1.msra.mxu0 %v545
    %1198 = vmatprep.subr.mxu0 %v550
    %1199 = vmatpush1.msra.mxu0 %v549
    %1200 = vmatprep.subr.mxu0 %v554
    %1201 = vmatpush1.msra.mxu0 %v553
    %1202 = vmatprep.subr.mxu0 %v558
    %1203 = vmatpush1.msra.mxu0 %v557
    %1204 = vmatprep.subr.mxu0 %v562
    %1205 = vmatpush1.msra.mxu0 %v561
    %1206 = vmatprep.subr.mxu0 %v566
    %1207 = vmatpush1.msra.mxu0 %v565
    %1208 = vmatprep.subr.mxu0 %v570
    %1209 = vmatpush1.msra.mxu0 %v569
    %1210 = vmatprep.subr.mxu0 %v574
    %1211 = vmatpush1.msra.mxu0 %v573
    %1212 = vmatprep.subr.mxu0 %v578
    %1213 = vmatpush1.msra.mxu0 %v577
    %1214 = vmatprep.subr.mxu0 %v582
    %1215 = vmatpush1.msra.mxu0 %v581
    %1216 = vmatprep.subr.mxu0 %v586
    %1217 = vmatpush1.msra.mxu0 %v585
    %1218 = vmatprep.subr.mxu0 %v590
    %1219 = vmatpush1.msra.mxu0 %v589
    %1220 = vmatprep.subr.mxu0 %v594
    %1221 = vmatpush1.msra.mxu0 %v593
    %1222 = vmatprep.subr.mxu0 %v598
    %1223 = vmatpush1.msra.mxu0 %v597
    %1224 = vmatprep.mubr.f32.mxu0 %v78
    %1225 = vmatmul.mubr.f32.gmra.mrb[0].mxu0 %v77
    %v1226 = vpop.f32.mrb[0].mxu0
    %v1227 = vadd.f32 %v1150, %v1226
    %v1228 = vpop.f32.mrb[0].mxu0
    %v1229 = vadd.f32 %v1152, %v1228
    %1230 = vmatprep.mubr.f32.mxu0 %v86
    %1231 = vmatmul.mubr.f32.gmra.mrb[0].mxu0 %v85
    %v1232 = vpop.f32.mrb[0].mxu0
    %v1233 = vadd.f32 %v1156, %v1232
    %v1234 = vpop.f32.mrb[0].mxu0
    %v1235 = vadd.f32 %v1158, %v1234
    %1236 = vdwg.mxu0
    %v1237 = vmax.f32 %v919, 0.0
    %v1238 = vmax.f32 %v921, 0.0
    %v1239 = vmax.f32 %v1227, 0.0
    %v1240 = vmax.f32 %v1229, 0.0
    %v1241 = vmax.f32 %v925, 0.0
    %v1242 = vmax.f32 %v927, 0.0
    %v1243 = vmax.f32 %v1233, 0.0
    %v1244 = vmax.f32 %v1235, 0.0
    %v1245 = vld [vmem:[#allocation6] sm:$0xff]
    %v1246 = vld [vmem:[#allocation6 + $0x8] sm:$0xff]
    %v1247 = vld [vmem:[#allocation6 + $0x10] sm:$0xff]
    %v1248 = vld [vmem:[#allocation6 + $0x18] sm:$0xff]
    %v1249 = vld [vmem:[#allocation6 + $0x20] sm:$0xff]
    %v1250 = vld [vmem:[#allocation6 + $0x28] sm:$0xff]
    %v1251 = vld [vmem:[#allocation6 + $0x30] sm:$0xff]
    %v1252 = vld [vmem:[#allocation6 + $0x38] sm:$0xff]
    %v1253 = vld [vmem:[#allocation6 + $0x40] sm:$0xff]
    %v1254 = vld [vmem:[#allocation6 + $0x48] sm:$0xff]
    %v1255 = vld [vmem:[#allocation6 + $0x50] sm:$0xff]
    %v1256 = vld [vmem:[#allocation6 + $0x58] sm:$0xff]
    %v1257 = vld [vmem:[#allocation6 + $0x60] sm:$0xff]
    %v1258 = vld [vmem:[#allocation6 + $0x68] sm:$0xff]
    %v1259 = vld [vmem:[#allocation6 + $0x70] sm:$0xff]
    %v1260 = vld [vmem:[#allocation6 + $0x78] sm:$0xff]
    %v1261 = vld [vmem:[#allocation6 + $0x80] sm:$0xff]
    %v1262 = vld [vmem:[#allocation6 + $0x88] sm:$0xff]
    %v1263 = vld [vmem:[#allocation6 + $0x90] sm:$0xff]
    %v1264 = vld [vmem:[#allocation6 + $0x98] sm:$0xff]
    %v1265 = vld [vmem:[#allocation6 + $0xa0] sm:$0xff]
    %v1266 = vld [vmem:[#allocation6 + $0xa8] sm:$0xff]
    %v1267 = vld [vmem:[#allocation6 + $0xb0] sm:$0xff]
    %v1268 = vld [vmem:[#allocation6 + $0xb8] sm:$0xff]
    %v1269 = vld [vmem:[#allocation6 + $0xc0] sm:$0xff]
    %v1270 = vld [vmem:[#allocation6 + $0xc8] sm:$0xff]
    %v1271 = vld [vmem:[#allocation6 + $0xd0] sm:$0xff]
    %v1272 = vld [vmem:[#allocation6 + $0xd8] sm:$0xff]
    %v1273 = vld [vmem:[#allocation6 + $0xe0] sm:$0xff]
    %v1274 = vld [vmem:[#allocation6 + $0xe8] sm:$0xff]
    %v1275 = vld [vmem:[#allocation6 + $0xf0] sm:$0xff]
    %v1276 = vld [vmem:[#allocation6 + $0xf8] sm:$0xff]
    %v1277 = vld [vmem:[#allocation6 + $0x100] sm:$0xff]
    %v1278 = vld [vmem:[#allocation6 + $0x108] sm:$0xff]
    %v1279 = vld [vmem:[#allocation6 + $0x110] sm:$0xff]
    %v1280 = vld [vmem:[#allocation6 + $0x118] sm:$0xff]
    %v1281 = vld [vmem:[#allocation6 + $0x120] sm:$0xff]
    %v1282 = vld [vmem:[#allocation6 + $0x128] sm:$0xff]
    %v1283 = vld [vmem:[#allocation6 + $0x130] sm:$0xff]
    %v1284 = vld [vmem:[#allocation6 + $0x138] sm:$0xff]
    %v1285 = vld [vmem:[#allocation6 + $0x140] sm:$0xff]
    %v1286 = vld [vmem:[#allocation6 + $0x148] sm:$0xff]
    %v1287 = vld [vmem:[#allocation6 + $0x150] sm:$0xff]
    %v1288 = vld [vmem:[#allocation6 + $0x158] sm:$0xff]
    %v1289 = vld [vmem:[#allocation6 + $0x160] sm:$0xff]
    %v1290 = vld [vmem:[#allocation6 + $0x168] sm:$0xff]
    %v1291 = vld [vmem:[#allocation6 + $0x170] sm:$0xff]
    %v1292 = vld [vmem:[#allocation6 + $0x178] sm:$0xff]
    %v1293 = vld [vmem:[#allocation6 + $0x180] sm:$0xff]
    %v1294 = vld [vmem:[#allocation6 + $0x188] sm:$0xff]
    %v1295 = vld [vmem:[#allocation6 + $0x190] sm:$0xff]
    %v1296 = vld [vmem:[#allocation6 + $0x198] sm:$0xff]
    %v1297 = vld [vmem:[#allocation6 + $0x1a0] sm:$0xff]
    %v1298 = vld [vmem:[#allocation6 + $0x1a8] sm:$0xff]
    %v1299 = vld [vmem:[#allocation6 + $0x1b0] sm:$0xff]
    %v1300 = vld [vmem:[#allocation6 + $0x1b8] sm:$0xff]
    %v1301 = vld [vmem:[#allocation6 + $0x1c0] sm:$0xff]
    %v1302 = vld [vmem:[#allocation6 + $0x1c8] sm:$0xff]
    %v1303 = vld [vmem:[#allocation6 + $0x1d0] sm:$0xff]
    %v1304 = vld [vmem:[#allocation6 + $0x1d8] sm:$0xff]
    %v1305 = vld [vmem:[#allocation6 + $0x1e0] sm:$0xff]
    %v1306 = vld [vmem:[#allocation6 + $0x1e8] sm:$0xff]
    %v1307 = vld [vmem:[#allocation6 + $0x1f0] sm:$0xff]
    %v1308 = vld [vmem:[#allocation6 + $0x1f8] sm:$0xff]
    %v1309 = vld [vmem:[#allocation7] sm:$0x1]
    %v1311 = vlaneseq
    %v1312 = vshrl.u32 %v1311, 7
    %v1313 = vsub.s32 0, %v1312
    %v1314 = vrot.slane %v1309, %v1313
    %1316 = vmatprep.subr.mxu0 0.0
    %1317 = vmatpush1.msra.mxu0 %v1245
    %1318 = vmatprep.subr.mxu0 0.0
    %1319 = vmatpush1.msra.mxu0 %v1246
    %1320 = vmatprep.subr.mxu0 0.0
    %1321 = vmatpush1.msra.mxu0 %v1247
    %1322 = vmatprep.subr.mxu0 0.0
    %1323 = vmatpush1.msra.mxu0 %v1248
    %1324 = vmatprep.subr.mxu0 0.0
    %1325 = vmatpush1.msra.mxu0 %v1249
    %1326 = vmatprep.subr.mxu0 0.0
    %1327 = vmatpush1.msra.mxu0 %v1250
    %1328 = vmatprep.subr.mxu0 0.0
    %1329 = vmatpush1.msra.mxu0 %v1251
    %1330 = vmatprep.subr.mxu0 0.0
    %1331 = vmatpush1.msra.mxu0 %v1252
    %1332 = vmatprep.subr.mxu0 0.0
    %1333 = vmatpush1.msra.mxu0 %v1253
    %1334 = vmatprep.subr.mxu0 0.0
    %1335 = vmatpush1.msra.mxu0 %v1254
    %1336 = vmatprep.subr.mxu0 0.0
    %1337 = vmatpush1.msra.mxu0 %v1255
    %1338 = vmatprep.subr.mxu0 0.0
    %1339 = vmatpush1.msra.mxu0 %v1256
    %1340 = vmatprep.subr.mxu0 0.0
    %1341 = vmatpush1.msra.mxu0 %v1257
    %1342 = vmatprep.subr.mxu0 0.0
    %1343 = vmatpush1.msra.mxu0 %v1258
    %1344 = vmatprep.subr.mxu0 0.0
    %1345 = vmatpush1.msra.mxu0 %v1259
    %1346 = vmatprep.subr.mxu0 0.0
    %1347 = vmatpush1.msra.mxu0 %v1260
    %1348 = vmatprep.subr.mxu0 0.0
    %1349 = vmatpush1.msra.mxu0 %v1261
    %1350 = vmatprep.subr.mxu0 0.0
    %1351 = vmatpush1.msra.mxu0 %v1262
    %1352 = vmatprep.subr.mxu0 0.0
    %1353 = vmatpush1.msra.mxu0 %v1263
    %1354 = vmatprep.subr.mxu0 0.0
    %1355 = vmatpush1.msra.mxu0 %v1264
    %1356 = vmatprep.subr.mxu0 0.0
    %1357 = vmatpush1.msra.mxu0 %v1265
    %1358 = vmatprep.subr.mxu0 0.0
    %1359 = vmatpush1.msra.mxu0 %v1266
    %1360 = vmatprep.subr.mxu0 0.0
    %1361 = vmatpush1.msra.mxu0 %v1267
    %1362 = vmatprep.subr.mxu0 0.0
    %1363 = vmatpush1.msra.mxu0 %v1268
    %1364 = vmatprep.subr.mxu0 0.0
    %1365 = vmatpush1.msra.mxu0 %v1269
    %1366 = vmatprep.subr.mxu0 0.0
    %1367 = vmatpush1.msra.mxu0 %v1270
    %1368 = vmatprep.subr.mxu0 0.0
    %1369 = vmatpush1.msra.mxu0 %v1271
    %1370 = vmatprep.subr.mxu0 0.0
    %1371 = vmatpush1.msra.mxu0 %v1272
    %1372 = vmatprep.subr.mxu0 0.0
    %1373 = vmatpush1.msra.mxu0 %v1273
    %1374 = vmatprep.subr.mxu0 0.0
    %1375 = vmatpush1.msra.mxu0 %v1274
    %1376 = vmatprep.subr.mxu0 0.0
    %1377 = vmatpush1.msra.mxu0 %v1275
    %1378 = vmatprep.subr.mxu0 0.0
    %1379 = vmatpush1.msra.mxu0 %v1276
    %1380 = vmatprep.mubr.f32.mxu0 %v1238
    %1381 = vmatmul.mubr.f32.gmra.mrb[0].mxu0 %v1237
    %v1382 = vpop.f32.mrb[0].mxu0
    %v1383 = vadd.f32 %v1314, %v1382
    %v1384 = vpop.f32.mrb[0].mxu0
    %1385 = vmatprep.mubr.f32.mxu0 %v1242
    %1386 = vmatmul.mubr.f32.gmra.mrb[0].mxu0 %v1241
    %v1387 = vpop.f32.mrb[0].mxu0
    %v1388 = vadd.f32 %v1314, %v1387
    %v1389 = vpop.f32.mrb[0].mxu0
    %1390 = vdwg.mxu0
    %1391 = vmatprep.subr.mxu0 0.0
    %1392 = vmatpush1.msra.mxu0 %v1277
    %1393 = vmatprep.subr.mxu0 0.0
    %1394 = vmatpush1.msra.mxu0 %v1278
    %1395 = vmatprep.subr.mxu0 0.0
    %1396 = vmatpush1.msra.mxu0 %v1279
    %1397 = vmatprep.subr.mxu0 0.0
    %1398 = vmatpush1.msra.mxu0 %v1280
    %1399 = vmatprep.subr.mxu0 0.0
    %1400 = vmatpush1.msra.mxu0 %v1281
    %1401 = vmatprep.subr.mxu0 0.0
    %1402 = vmatpush1.msra.mxu0 %v1282
    %1403 = vmatprep.subr.mxu0 0.0
    %1404 = vmatpush1.msra.mxu0 %v1283
    %1405 = vmatprep.subr.mxu0 0.0
    %1406 = vmatpush1.msra.mxu0 %v1284
    %1407 = vmatprep.subr.mxu0 0.0
    %1408 = vmatpush1.msra.mxu0 %v1285
    %1409 = vmatprep.subr.mxu0 0.0
    %1410 = vmatpush1.msra.mxu0 %v1286
    %1411 = vmatprep.subr.mxu0 0.0
    %1412 = vmatpush1.msra.mxu0 %v1287
    %1413 = vmatprep.subr.mxu0 0.0
    %1414 = vmatpush1.msra.mxu0 %v1288
    %1415 = vmatprep.subr.mxu0 0.0
    %1416 = vmatpush1.msra.mxu0 %v1289
    %1417 = vmatprep.subr.mxu0 0.0
    %1418 = vmatpush1.msra.mxu0 %v1290
    %1419 = vmatprep.subr.mxu0 0.0
    %1420 = vmatpush1.msra.mxu0 %v1291
    %1421 = vmatprep.subr.mxu0 0.0
    %1422 = vmatpush1.msra.mxu0 %v1292
    %1423 = vmatprep.subr.mxu0 0.0
    %1424 = vmatpush1.msra.mxu0 %v1293
    %1425 = vmatprep.subr.mxu0 0.0
    %1426 = vmatpush1.msra.mxu0 %v1294
    %1427 = vmatprep.subr.mxu0 0.0
    %1428 = vmatpush1.msra.mxu0 %v1295
    %1429 = vmatprep.subr.mxu0 0.0
    %1430 = vmatpush1.msra.mxu0 %v1296
    %1431 = vmatprep.subr.mxu0 0.0
    %1432 = vmatpush1.msra.mxu0 %v1297
    %1433 = vmatprep.subr.mxu0 0.0
    %1434 = vmatpush1.msra.mxu0 %v1298
    %1435 = vmatprep.subr.mxu0 0.0
    %1436 = vmatpush1.msra.mxu0 %v1299
    %1437 = vmatprep.subr.mxu0 0.0
    %1438 = vmatpush1.msra.mxu0 %v1300
    %1439 = vmatprep.subr.mxu0 0.0
    %1440 = vmatpush1.msra.mxu0 %v1301
    %1441 = vmatprep.subr.mxu0 0.0
    %1442 = vmatpush1.msra.mxu0 %v1302
    %1443 = vmatprep.subr.mxu0 0.0
    %1444 = vmatpush1.msra.mxu0 %v1303
    %1445 = vmatprep.subr.mxu0 0.0
    %1446 = vmatpush1.msra.mxu0 %v1304
    %1447 = vmatprep.subr.mxu0 0.0
    %1448 = vmatpush1.msra.mxu0 %v1305
    %1449 = vmatprep.subr.mxu0 0.0
    %1450 = vmatpush1.msra.mxu0 %v1306
    %1451 = vmatprep.subr.mxu0 0.0
    %1452 = vmatpush1.msra.mxu0 %v1307
    %1453 = vmatprep.subr.mxu0 0.0
    %1454 = vmatpush1.msra.mxu0 %v1308
    %1455 = vmatprep.mubr.f32.mxu0 %v1240
    %1456 = vmatmul.mubr.f32.gmra.mrb[0].mxu0 %v1239
    %v1457 = vpop.f32.mrb[0].mxu0
    %v1458 = vadd.f32 %v1383, %v1457
    %v1459 = vpop.f32.mrb[0].mxu0
    %1460 = vmatprep.mubr.f32.mxu0 %v1244
    %1461 = vmatmul.mubr.f32.gmra.mrb[0].mxu0 %v1243
    %v1462 = vpop.f32.mrb[0].mxu0
    %v1463 = vadd.f32 %v1388, %v1462
    %v1464 = vpop.f32.mrb[0].mxu0
    %1465 = vdwg.mxu0
    %1466 = vst [vmem:[%s5] sm:$0xff] %v1458
    %1467 = vst [vmem:[%s5 + $0x8] sm:$0xff] %v1463
    // Predicated region
    $region38: #{body_model_forward.1} parent=1 // pred_check
      _
    $region39: #{body_model_forward.1} parent=1 // pred_check_branch
      %1469 = sbr.rel (0) target = $region41
    $region40: #{body_model_forward.1} parent=1 // pred_region
      _
    $region41: #{body_model_forward.1} parent=1 // pred_fallthru
      _
    // Predicated region
    $region42: #{body_model_forward.1} parent=1 // pred_check
      _
    $region43: #{body_model_forward.1} parent=1 // pred_check_branch
      %1471 = sbr.rel (0) target = $region45
    $region44: #{body_model_forward.1} parent=1 // pred_region
      _
    $region45: #{body_model_forward.1} parent=1 // pred_fallthru
      _
    %1472 = vsyncpa [#allocation3], 1
    %1473 = vsyncpa [#allocation5], 1
    %1474 = vsyncpa [#allocation8], 1

</llo_original>
